<compile_context>
chip_gen: v7x
topology: tpu7x:2x2x1
jax: 0.10.0
libtpu: 0.0.40
codegen_flags: <defaults>
</compile_context>

<pallas_src>
import functools
import math

import jax
import jax.numpy as jnp
import numpy as np
from jax import lax
from jax.experimental import pallas as pl
from jax.experimental.pallas import tpu as pltpu


# ----------------------------------------------------------------------------
# Fused Pallas kernel: all four blocks, channel-packed lane-dense layout
# ----------------------------------------------------------------------------
def _reg_tools_kernel(x_ref, dw_ref, pw_ref, o_ref, pad_ref, *, H, W, n_slots):
    # x_ref  : (1, H+2, n_slots*W) VMEM  one batch element, channel-packed,
    #          zero rows top/bottom, channel c owns lanes [c*W, (c+1)*W)
    # dw_ref : (4, 9, n_slots*W)   VMEM  per-block depthwise tap rows
    #          (image left/right zero-pad folded in as zeroed weights)
    # pw_ref : (4, n_slots, n_slots*W) VMEM  per-block pointwise "roll" rows
    #          (BN scale folded in for the first three blocks)
    # o_ref  : (1, H, n_slots*W)   VMEM  lane-dense output slab
    # pad_ref: (H+2, n_slots*W)    VMEM scratch for zero-bordered intermediates
    CW = n_slots * W

    zero_row = jnp.zeros((1, CW), jnp.float32)
    pad_ref[0:1, :] = zero_row            # border rows stay zero for all blocks
    pad_ref[H + 1:H + 2, :] = zero_row

    def block(read_rows, bi, relu):
        # ---- depthwise 3x3: 3 sublane slices x 3 lane rolls x weight row ----
        acc = None
        for kh in range(3):
            xs = read_rows(kh)                               # (H, CW)
            for kw in range(3):
                if kw == 0:                                  # left-neighbor tap
                    s = pltpu.roll(xs, 1, 1)
                elif kw == 2:                                # right-neighbor tap
                    s = pltpu.roll(xs, CW - 1, 1)            # == shift -1
                else:
                    s = xs
                t = s * dw_ref[bi, kh * 3 + kw:kh * 3 + kw + 1, :]
                acc = t if acc is None else acc + t
        # ---- pointwise 1x1 (+ folded BN scale): circular channel rolls ----
        y = None
        for d in range(n_slots):
            s = acc if d == 0 else pltpu.roll(acc, d * W, 1)
            t = s * pw_ref[bi, d:d + 1, :]
            y = t if y is None else y + t
        if relu:
            y = jnp.clip(y, 0.0, 6.0)                        # ReLU6
        return y

    y = block(lambda kh: x_ref[0, kh:kh + H, :], 0, True)
    pad_ref[1:H + 1, :] = y
    y = block(lambda kh: pad_ref[kh:kh + H, :], 1, True)
    pad_ref[1:H + 1, :] = y
    y = block(lambda kh: pad_ref[kh:kh + H, :], 2, True)
    pad_ref[1:H + 1, :] = y
    y = block(lambda kh: pad_ref[kh:kh + H, :], 3, False)

    o_ref[0, :, :] = y                                       # lane-dense store


# ----------------------------------------------------------------------------
# Parameter construction (mirrors the PyTorch __init__ initialization)
# ----------------------------------------------------------------------------
def init_params(key, in_channels, out_channels, W, eps=1e-5):
    """Returns ((dw_all, pw_all) kernel tables, torch-layout params for ref)."""
    n_slots = out_channels
    assert in_channels <= n_slots
    CW = n_slots * W
    block_io = [(in_channels, out_channels)] + [(out_channels, out_channels)] * 3
    relu_flags = [True, True, True, False]
    bn_scale = 1.0 / math.sqrt(1.0 + eps)   # gamma / sqrt(running_var + eps)

    dw_all = np.zeros((4, 9, CW), np.float32)
    pw_all = np.zeros((4, n_slots, CW), np.float32)
    torch_params = []
    for b, ((cin, cout), relu) in enumerate(zip(block_io, relu_flags)):
        key, kdw, kpw = jax.random.split(key, 3)
        # depthwise conv: torch weight (cin, 1, 3, 3); n = 3*3*out_channels(=cin)
        std_dw = math.sqrt(2.0 / (3 * 3 * cin))
        dw_torch = jax.random.normal(kdw, (cin, 1, 3, 3), jnp.float32) * std_dw
        # pointwise conv: torch weight (cout, cin, 1, 1); n = 1*1*cout
        std_pw = math.sqrt(2.0 / cout)
        pw_torch = jax.random.normal(kpw, (cout, cin, 1, 1), jnp.float32) * std_pw
        torch_params.append((dw_torch, pw_torch, relu))

        # ---- depthwise tap rows (per-lane broadcast of per-channel taps) ----
        dwn = np.asarray(dw_torch)[:, 0]                     # (cin, 3, 3)
        for c in range(cin):
            for kh in range(3):
                for kw in range(3):
                    dw_all[b, kh * 3 + kw, c * W:(c + 1) * W] = dwn[c, kh, kw]
        # fold the image left/right zero padding into the weights
        for c in range(n_slots):
            for kh in range(3):
                dw_all[b, kh * 3 + 0, c * W] = 0.0           # tap hits pad at w==0
                dw_all[b, kh * 3 + 2, c * W + W - 1] = 0.0   # tap hits pad at w==W-1

        # ---- pointwise rows for the circular-roll channel mix (BN folded) ----
        pw_eff = np.zeros((n_slots, n_slots), np.float32)    # [ci, co]
        pwn = np.asarray(pw_torch)[:, :, 0, 0]               # (cout, cin)
        pw_eff[:cin, :cout] = pwn.T * (bn_scale if relu else 1.0)
        for d in range(n_slots):
            for co in range(n_slots):
                pw_all[b, d, co * W:(co + 1) * W] = pw_eff[(co - d) % n_slots, co]

    return (jnp.asarray(dw_all), jnp.asarray(pw_all)), torch_params


# ----------------------------------------------------------------------------
# Forward (NCHW in, NCHW out — PyTorch convention)
# ----------------------------------------------------------------------------
def reg_tools_forward(x_nchw, kernel_params):
    dw_all, pw_all = kernel_params
    B, Cin, H, W = x_nchw.shape
    n_slots = pw_all.shape[1]
    CW = n_slots * W

    # glue: NCHW -> channel-packed lane-dense (B, H+2, n_slots*W), zero borders
    x_t = jnp.transpose(x_nchw, (0, 2, 1, 3)).reshape(B, H, Cin * W)
    x_packed = jnp.pad(x_t, ((0, 0), (1, 1), (0, CW - Cin * W)))

    kern = functools.partial(_reg_tools_kernel, H=H, W=W, n_slots=n_slots)
    out = pl.pallas_call(
        kern,
        grid=(B,),
        out_shape=jax.ShapeDtypeStruct((B, H, CW), jnp.float32),
        in_specs=[pl.BlockSpec((1, H + 2, CW), lambda b: (b, 0, 0)),
                  pl.BlockSpec((4, 9, CW), lambda b: (0, 0, 0)),
                  pl.BlockSpec((4, n_slots, CW), lambda b: (0, 0, 0))],
        out_specs=pl.BlockSpec((1, H, CW), lambda b: (b, 0, 0)),
        scratch_shapes=[pltpu.VMEM((H + 2, CW), jnp.float32)],
        compiler_params=pltpu.CompilerParams(
            dimension_semantics=("parallel",)),
    )(x_packed, dw_all, pw_all)

    # lane-dense slab -> NCHW: out[b, h, co*W + w] == result[b, co, h, w]
    out = out.reshape(B, H, n_slots, W)
    return jnp.transpose(out, (0, 2, 1, 3))


# ----------------------------------------------------------------------------
# Pure-JAX reference (lax convs, NCHW), for correctness check
# ----------------------------------------------------------------------------
def reference_forward(x, torch_params, eps=1e-5):
    dn = ('NCHW', 'OIHW', 'NCHW')
    for dw_w, pw_w, has_bn_relu in torch_params:
        groups = dw_w.shape[0]
        x = lax.conv_general_dilated(x, dw_w, (1, 1), ((1, 1), (1, 1)),
                                     dimension_numbers=dn,
                                     feature_group_count=groups)
        x = lax.conv_general_dilated(x, pw_w, (1, 1), ((0, 0), (0, 0)),
                                     dimension_numbers=dn)
        if has_bn_relu:
            x = x * (1.0 / jnp.sqrt(1.0 + eps))
            x = jnp.clip(x, 0.0, 6.0)
    return x


if __name__ == "__main__":
    B, CIN, COUT, H, W = 2, 4, 8, 16, 16
    key = jax.random.PRNGKey(0)
    kx, kp = jax.random.split(key)
    x = jax.random.normal(kx, (B, CIN, H, W), jnp.float32)

    kernel_params, torch_params = init_params(kp, CIN, COUT, W)

    out = jax.block_until_ready(reg_tools_forward(x, kernel_params))
    ref = jax.block_until_ready(reference_forward(x, torch_params))

    assert out.shape == (B, COUT, H, W), out.shape
    np.testing.assert_allclose(np.asarray(out), np.asarray(ref),
                               rtol=1e-4, atol=1e-4)
    print("KERNEL_OK")
</pallas_src>

<mosaic_0001>
module attributes {stable_mosaic.version = 11 : i64} {
  func.func @_reg_tools_kernel(%arg0: i32, %arg1: memref<1x18x128xf32, #tpu.memory_space<vmem>>, %arg2: memref<4x9x128xf32, #tpu.memory_space<vmem>>, %arg3: memref<4x8x128xf32, #tpu.memory_space<vmem>>, %arg4: memref<1x16x128xf32, #tpu.memory_space<vmem>>, %arg5: memref<18x128xf32, #tpu.memory_space<vmem>>) attributes {dimension_semantics = [#tpu.dimension_semantics<parallel>], iteration_bounds = array<i64: 2>, scalar_prefetch = 0 : i64, scratch_operands = 1 : i64, tpu.core_type = #tpu.core_type<tc>, window_params = [{transform_indices = @transform_0, window_bounds = array<i64: 1, 18, 128>}, {pipeline_mode = #tpu.pipeline_mode<synchronous>, transform_indices = @transform_1, window_bounds = array<i64: 4, 9, 128>}, {pipeline_mode = #tpu.pipeline_mode<synchronous>, transform_indices = @transform_2, window_bounds = array<i64: 4, 8, 128>}, {transform_indices = @transform_3, window_bounds = array<i64: 1, 16, 128>}]} {
    %cst = arith.constant 0.000000e+00 : f32
    %0 = vector.broadcast %cst : f32 to vector<1x128xf32>
    %c0 = arith.constant 0 : index
    %c0_0 = arith.constant 0 : index
    %1 = vector.load %arg5[%c0, %c0_0] : memref<18x128xf32, #tpu.memory_space<vmem>>, vector<1x128xf32>
    tpu.vector_store %arg5[%c0, %c0_0], %0 {strides = array<i32>} : memref<18x128xf32, #tpu.memory_space<vmem>>, vector<1x128xf32>,
    %c17 = arith.constant 17 : index
    %c0_1 = arith.constant 0 : index
    %2 = vector.load %arg5[%c17, %c0_1] : memref<18x128xf32, #tpu.memory_space<vmem>>, vector<1x128xf32>
    tpu.vector_store %arg5[%c17, %c0_1], %0 {strides = array<i32>} : memref<18x128xf32, #tpu.memory_space<vmem>>, vector<1x128xf32>,
    %c0_2 = arith.constant 0 : index
    %c0_3 = arith.constant 0 : index
    %c0_4 = arith.constant 0 : index
    %3 = vector.load %arg1[%c0_2, %c0_3, %c0_4] : memref<1x18x128xf32, #tpu.memory_space<vmem>>, vector<1x16x128xf32>
    %4 = vector.shape_cast %3 : vector<1x16x128xf32> to vector<16x128xf32>
    %c1_i32 = arith.constant 1 : i32
    %5 = tpu.dynamic_rotate %4 by %c1_i32 dim 1 : vector<16x128xf32>, i32 -> vector<16x128xf32>
    %c0_5 = arith.constant 0 : index
    %c0_6 = arith.constant 0 : index
    %c0_7 = arith.constant 0 : index
    %6 = vector.load %arg2[%c0_5, %c0_6, %c0_7] : memref<4x9x128xf32, #tpu.memory_space<vmem>>, vector<1x1x128xf32>
    %7 = vector.shape_cast %6 : vector<1x1x128xf32> to vector<1x128xf32>
    %8 = vector.broadcast %7 : vector<1x128xf32> to vector<16x128xf32>
    %9 = arith.mulf %5, %8 : vector<16x128xf32>
    %c0_8 = arith.constant 0 : index
    %c1 = arith.constant 1 : index
    %c0_9 = arith.constant 0 : index
    %10 = vector.load %arg2[%c0_8, %c1, %c0_9] : memref<4x9x128xf32, #tpu.memory_space<vmem>>, vector<1x1x128xf32>
    %11 = vector.shape_cast %10 : vector<1x1x128xf32> to vector<1x128xf32>
    %12 = vector.broadcast %11 : vector<1x128xf32> to vector<16x128xf32>
    %13 = arith.mulf %4, %12 : vector<16x128xf32>
    %14 = arith.addf %9, %13 : vector<16x128xf32>
    %c127_i32 = arith.constant 127 : i32
    %15 = tpu.dynamic_rotate %4 by %c127_i32 dim 1 : vector<16x128xf32>, i32 -> vector<16x128xf32>
    %c0_10 = arith.constant 0 : index
    %c2 = arith.constant 2 : index
    %c0_11 = arith.constant 0 : index
    %16 = vector.load %arg2[%c0_10, %c2, %c0_11] : memref<4x9x128xf32, #tpu.memory_space<vmem>>, vector<1x1x128xf32>
    %17 = vector.shape_cast %16 : vector<1x1x128xf32> to vector<1x128xf32>
    %18 = vector.broadcast %17 : vector<1x128xf32> to vector<16x128xf32>
    %19 = arith.mulf %15, %18 : vector<16x128xf32>
    %20 = arith.addf %14, %19 : vector<16x128xf32>
    %c0_12 = arith.constant 0 : index
    %c1_13 = arith.constant 1 : index
    %c0_14 = arith.constant 0 : index
    %21 = vector.load %arg1[%c0_12, %c1_13, %c0_14] : memref<1x18x128xf32, #tpu.memory_space<vmem>>, vector<1x16x128xf32>
    %22 = vector.shape_cast %21 : vector<1x16x128xf32> to vector<16x128xf32>
    %c1_i32_15 = arith.constant 1 : i32
    %23 = tpu.dynamic_rotate %22 by %c1_i32_15 dim 1 : vector<16x128xf32>, i32 -> vector<16x128xf32>
    %c0_16 = arith.constant 0 : index
    %c3 = arith.constant 3 : index
    %c0_17 = arith.constant 0 : index
    %24 = vector.load %arg2[%c0_16, %c3, %c0_17] : memref<4x9x128xf32, #tpu.memory_space<vmem>>, vector<1x1x128xf32>
    %25 = vector.shape_cast %24 : vector<1x1x128xf32> to vector<1x128xf32>
    %26 = vector.broadcast %25 : vector<1x128xf32> to vector<16x128xf32>
    %27 = arith.mulf %23, %26 : vector<16x128xf32>
    %28 = arith.addf %20, %27 : vector<16x128xf32>
    %c0_18 = arith.constant 0 : index
    %c4 = arith.constant 4 : index
    %c0_19 = arith.constant 0 : index
    %29 = vector.load %arg2[%c0_18, %c4, %c0_19] : memref<4x9x128xf32, #tpu.memory_space<vmem>>, vector<1x1x128xf32>
    %30 = vector.shape_cast %29 : vector<1x1x128xf32> to vector<1x128xf32>
    %31 = vector.broadcast %30 : vector<1x128xf32> to vector<16x128xf32>
    %32 = arith.mulf %22, %31 : vector<16x128xf32>
    %33 = arith.addf %28, %32 : vector<16x128xf32>
    %c127_i32_20 = arith.constant 127 : i32
    %34 = tpu.dynamic_rotate %22 by %c127_i32_20 dim 1 : vector<16x128xf32>, i32 -> vector<16x128xf32>
    %c0_21 = arith.constant 0 : index
    %c5 = arith.constant 5 : index
    %c0_22 = arith.constant 0 : index
    %35 = vector.load %arg2[%c0_21, %c5, %c0_22] : memref<4x9x128xf32, #tpu.memory_space<vmem>>, vector<1x1x128xf32>
    %36 = vector.shape_cast %35 : vector<1x1x128xf32> to vector<1x128xf32>
    %37 = vector.broadcast %36 : vector<1x128xf32> to vector<16x128xf32>
    %38 = arith.mulf %34, %37 : vector<16x128xf32>
    %39 = arith.addf %33, %38 : vector<16x128xf32>
    %c0_23 = arith.constant 0 : index
    %c2_24 = arith.constant 2 : index
    %c0_25 = arith.constant 0 : index
    %40 = vector.load %arg1[%c0_23, %c2_24, %c0_25] : memref<1x18x128xf32, #tpu.memory_space<vmem>>, vector<1x16x128xf32>
    %41 = vector.shape_cast %40 : vector<1x16x128xf32> to vector<16x128xf32>
    %c1_i32_26 = arith.constant 1 : i32
    %42 = tpu.dynamic_rotate %41 by %c1_i32_26 dim 1 : vector<16x128xf32>, i32 -> vector<16x128xf32>
    %c0_27 = arith.constant 0 : index
    %c6 = arith.constant 6 : index
    %c0_28 = arith.constant 0 : index
    %43 = vector.load %arg2[%c0_27, %c6, %c0_28] : memref<4x9x128xf32, #tpu.memory_space<vmem>>, vector<1x1x128xf32>
    %44 = vector.shape_cast %43 : vector<1x1x128xf32> to vector<1x128xf32>
    %45 = vector.broadcast %44 : vector<1x128xf32> to vector<16x128xf32>
    %46 = arith.mulf %42, %45 : vector<16x128xf32>
    %47 = arith.addf %39, %46 : vector<16x128xf32>
    %c0_29 = arith.constant 0 : index
    %c7 = arith.constant 7 : index
    %c0_30 = arith.constant 0 : index
    %48 = vector.load %arg2[%c0_29, %c7, %c0_30] : memref<4x9x128xf32, #tpu.memory_space<vmem>>, vector<1x1x128xf32>
    %49 = vector.shape_cast %48 : vector<1x1x128xf32> to vector<1x128xf32>
    %50 = vector.broadcast %49 : vector<1x128xf32> to vector<16x128xf32>
    %51 = arith.mulf %41, %50 : vector<16x128xf32>
    %52 = arith.addf %47, %51 : vector<16x128xf32>
    %c127_i32_31 = arith.constant 127 : i32
    %53 = tpu.dynamic_rotate %41 by %c127_i32_31 dim 1 : vector<16x128xf32>, i32 -> vector<16x128xf32>
    %c0_32 = arith.constant 0 : index
    %c8 = arith.constant 8 : index
    %c0_33 = arith.constant 0 : index
    %54 = vector.load %arg2[%c0_32, %c8, %c0_33] : memref<4x9x128xf32, #tpu.memory_space<vmem>>, vector<1x1x128xf32>
    %55 = vector.shape_cast %54 : vector<1x1x128xf32> to vector<1x128xf32>
    %56 = vector.broadcast %55 : vector<1x128xf32> to vector<16x128xf32>
    %57 = arith.mulf %53, %56 : vector<16x128xf32>
    %58 = arith.addf %52, %57 : vector<16x128xf32>
    %c0_34 = arith.constant 0 : index
    %c0_35 = arith.constant 0 : index
    %c0_36 = arith.constant 0 : index
    %59 = vector.load %arg3[%c0_34, %c0_35, %c0_36] : memref<4x8x128xf32, #tpu.memory_space<vmem>>, vector<1x1x128xf32>
    %60 = vector.shape_cast %59 : vector<1x1x128xf32> to vector<1x128xf32>
    %61 = vector.broadcast %60 : vector<1x128xf32> to vector<16x128xf32>
    %62 = arith.mulf %58, %61 : vector<16x128xf32>
    %c16_i32 = arith.constant 16 : i32
    %63 = tpu.dynamic_rotate %58 by %c16_i32 dim 1 : vector<16x128xf32>, i32 -> vector<16x128xf32>
    %c0_37 = arith.constant 0 : index
    %c1_38 = arith.constant 1 : index
    %c0_39 = arith.constant 0 : index
    %64 = vector.load %arg3[%c0_37, %c1_38, %c0_39] : memref<4x8x128xf32, #tpu.memory_space<vmem>>, vector<1x1x128xf32>
    %65 = vector.shape_cast %64 : vector<1x1x128xf32> to vector<1x128xf32>
    %66 = vector.broadcast %65 : vector<1x128xf32> to vector<16x128xf32>
    %67 = arith.mulf %63, %66 : vector<16x128xf32>
    %68 = arith.addf %62, %67 : vector<16x128xf32>
    %c32_i32 = arith.constant 32 : i32
    %69 = tpu.dynamic_rotate %58 by %c32_i32 dim 1 : vector<16x128xf32>, i32 -> vector<16x128xf32>
    %c0_40 = arith.constant 0 : index
    %c2_41 = arith.constant 2 : index
    %c0_42 = arith.constant 0 : index
    %70 = vector.load %arg3[%c0_40, %c2_41, %c0_42] : memref<4x8x128xf32, #tpu.memory_space<vmem>>, vector<1x1x128xf32>
    %71 = vector.shape_cast %70 : vector<1x1x128xf32> to vector<1x128xf32>
    %72 = vector.broadcast %71 : vector<1x128xf32> to vector<16x128xf32>
    %73 = arith.mulf %69, %72 : vector<16x128xf32>
    %74 = arith.addf %68, %73 : vector<16x128xf32>
    %c48_i32 = arith.constant 48 : i32
    %75 = tpu.dynamic_rotate %58 by %c48_i32 dim 1 : vector<16x128xf32>, i32 -> vector<16x128xf32>
    %c0_43 = arith.constant 0 : index
    %c3_44 = arith.constant 3 : index
    %c0_45 = arith.constant 0 : index
    %76 = vector.load %arg3[%c0_43, %c3_44, %c0_45] : memref<4x8x128xf32, #tpu.memory_space<vmem>>, vector<1x1x128xf32>
    %77 = vector.shape_cast %76 : vector<1x1x128xf32> to vector<1x128xf32>
    %78 = vector.broadcast %77 : vector<1x128xf32> to vector<16x128xf32>
    %79 = arith.mulf %75, %78 : vector<16x128xf32>
    %80 = arith.addf %74, %79 : vector<16x128xf32>
    %c64_i32 = arith.constant 64 : i32
    %81 = tpu.dynamic_rotate %58 by %c64_i32 dim 1 : vector<16x128xf32>, i32 -> vector<16x128xf32>
    %c0_46 = arith.constant 0 : index
    %c4_47 = arith.constant 4 : index
    %c0_48 = arith.constant 0 : index
    %82 = vector.load %arg3[%c0_46, %c4_47, %c0_48] : memref<4x8x128xf32, #tpu.memory_space<vmem>>, vector<1x1x128xf32>
    %83 = vector.shape_cast %82 : vector<1x1x128xf32> to vector<1x128xf32>
    %84 = vector.broadcast %83 : vector<1x128xf32> to vector<16x128xf32>
    %85 = arith.mulf %81, %84 : vector<16x128xf32>
    %86 = arith.addf %80, %85 : vector<16x128xf32>
    %c80_i32 = arith.constant 80 : i32
    %87 = tpu.dynamic_rotate %58 by %c80_i32 dim 1 : vector<16x128xf32>, i32 -> vector<16x128xf32>
    %c0_49 = arith.constant 0 : index
    %c5_50 = arith.constant 5 : index
    %c0_51 = arith.constant 0 : index
    %88 = vector.load %arg3[%c0_49, %c5_50, %c0_51] : memref<4x8x128xf32, #tpu.memory_space<vmem>>, vector<1x1x128xf32>
    %89 = vector.shape_cast %88 : vector<1x1x128xf32> to vector<1x128xf32>
    %90 = vector.broadcast %89 : vector<1x128xf32> to vector<16x128xf32>
    %91 = arith.mulf %87, %90 : vector<16x128xf32>
    %92 = arith.addf %86, %91 : vector<16x128xf32>
    %c96_i32 = arith.constant 96 : i32
    %93 = tpu.dynamic_rotate %58 by %c96_i32 dim 1 : vector<16x128xf32>, i32 -> vector<16x128xf32>
    %c0_52 = arith.constant 0 : index
    %c6_53 = arith.constant 6 : index
    %c0_54 = arith.constant 0 : index
    %94 = vector.load %arg3[%c0_52, %c6_53, %c0_54] : memref<4x8x128xf32, #tpu.memory_space<vmem>>, vector<1x1x128xf32>
    %95 = vector.shape_cast %94 : vector<1x1x128xf32> to vector<1x128xf32>
    %96 = vector.broadcast %95 : vector<1x128xf32> to vector<16x128xf32>
    %97 = arith.mulf %93, %96 : vector<16x128xf32>
    %98 = arith.addf %92, %97 : vector<16x128xf32>
    %c112_i32 = arith.constant 112 : i32
    %99 = tpu.dynamic_rotate %58 by %c112_i32 dim 1 : vector<16x128xf32>, i32 -> vector<16x128xf32>
    %c0_55 = arith.constant 0 : index
    %c7_56 = arith.constant 7 : index
    %c0_57 = arith.constant 0 : index
    %100 = vector.load %arg3[%c0_55, %c7_56, %c0_57] : memref<4x8x128xf32, #tpu.memory_space<vmem>>, vector<1x1x128xf32>
    %101 = vector.shape_cast %100 : vector<1x1x128xf32> to vector<1x128xf32>
    %102 = vector.broadcast %101 : vector<1x128xf32> to vector<16x128xf32>
    %103 = arith.mulf %99, %102 : vector<16x128xf32>
    %104 = arith.addf %98, %103 : vector<16x128xf32>
    %cst_58 = arith.constant 0.000000e+00 : f32
    %cst_59 = arith.constant 6.000000e+00 : f32
    %105 = vector.broadcast %cst_58 : f32 to vector<16x128xf32>
    %106 = arith.maximumf %105, %104 : vector<16x128xf32>
    %107 = vector.broadcast %cst_59 : f32 to vector<16x128xf32>
    %108 = arith.minimumf %107, %106 : vector<16x128xf32>
    %c1_60 = arith.constant 1 : index
    %c0_61 = arith.constant 0 : index
    %109 = vector.load %arg5[%c1_60, %c0_61] : memref<18x128xf32, #tpu.memory_space<vmem>>, vector<16x128xf32>
    tpu.vector_store %arg5[%c1_60, %c0_61], %108 {strides = array<i32>} : memref<18x128xf32, #tpu.memory_space<vmem>>, vector<16x128xf32>,
    %c0_62 = arith.constant 0 : index
    %c0_63 = arith.constant 0 : index
    %110 = vector.load %arg5[%c0_62, %c0_63] : memref<18x128xf32, #tpu.memory_space<vmem>>, vector<16x128xf32>
    %c1_i32_64 = arith.constant 1 : i32
    %111 = tpu.dynamic_rotate %110 by %c1_i32_64 dim 1 : vector<16x128xf32>, i32 -> vector<16x128xf32>
    %c1_65 = arith.constant 1 : index
    %c0_66 = arith.constant 0 : index
    %c0_67 = arith.constant 0 : index
    %112 = vector.load %arg2[%c1_65, %c0_66, %c0_67] : memref<4x9x128xf32, #tpu.memory_space<vmem>>, vector<1x1x128xf32>
    %113 = vector.shape_cast %112 : vector<1x1x128xf32> to vector<1x128xf32>
    %114 = vector.broadcast %113 : vector<1x128xf32> to vector<16x128xf32>
    %115 = arith.mulf %111, %114 : vector<16x128xf32>
    %c1_68 = arith.constant 1 : index
    %c1_69 = arith.constant 1 : index
    %c0_70 = arith.constant 0 : index
    %116 = vector.load %arg2[%c1_68, %c1_69, %c0_70] : memref<4x9x128xf32, #tpu.memory_space<vmem>>, vector<1x1x128xf32>
    %117 = vector.shape_cast %116 : vector<1x1x128xf32> to vector<1x128xf32>
    %118 = vector.broadcast %117 : vector<1x128xf32> to vector<16x128xf32>
    %119 = arith.mulf %110, %118 : vector<16x128xf32>
    %120 = arith.addf %115, %119 : vector<16x128xf32>
    %c127_i32_71 = arith.constant 127 : i32
    %121 = tpu.dynamic_rotate %110 by %c127_i32_71 dim 1 : vector<16x128xf32>, i32 -> vector<16x128xf32>
    %c1_72 = arith.constant 1 : index
    %c2_73 = arith.constant 2 : index
    %c0_74 = arith.constant 0 : index
    %122 = vector.load %arg2[%c1_72, %c2_73, %c0_74] : memref<4x9x128xf32, #tpu.memory_space<vmem>>, vector<1x1x128xf32>
    %123 = vector.shape_cast %122 : vector<1x1x128xf32> to vector<1x128xf32>
    %124 = vector.broadcast %123 : vector<1x128xf32> to vector<16x128xf32>
    %125 = arith.mulf %121, %124 : vector<16x128xf32>
    %126 = arith.addf %120, %125 : vector<16x128xf32>
    %c1_75 = arith.constant 1 : index
    %c0_76 = arith.constant 0 : index
    %127 = vector.load %arg5[%c1_75, %c0_76] : memref<18x128xf32, #tpu.memory_space<vmem>>, vector<16x128xf32>
    %c1_i32_77 = arith.constant 1 : i32
    %128 = tpu.dynamic_rotate %127 by %c1_i32_77 dim 1 : vector<16x128xf32>, i32 -> vector<16x128xf32>
    %c1_78 = arith.constant 1 : index
    %c3_79 = arith.constant 3 : index
    %c0_80 = arith.constant 0 : index
    %129 = vector.load %arg2[%c1_78, %c3_79, %c0_80] : memref<4x9x128xf32, #tpu.memory_space<vmem>>, vector<1x1x128xf32>
    %130 = vector.shape_cast %129 : vector<1x1x128xf32> to vector<1x128xf32>
    %131 = vector.broadcast %130 : vector<1x128xf32> to vector<16x128xf32>
    %132 = arith.mulf %128, %131 : vector<16x128xf32>
    %133 = arith.addf %126, %132 : vector<16x128xf32>
    %c1_81 = arith.constant 1 : index
    %c4_82 = arith.constant 4 : index
    %c0_83 = arith.constant 0 : index
    %134 = vector.load %arg2[%c1_81, %c4_82, %c0_83] : memref<4x9x128xf32, #tpu.memory_space<vmem>>, vector<1x1x128xf32>
    %135 = vector.shape_cast %134 : vector<1x1x128xf32> to vector<1x128xf32>
    %136 = vector.broadcast %135 : vector<1x128xf32> to vector<16x128xf32>
    %137 = arith.mulf %127, %136 : vector<16x128xf32>
    %138 = arith.addf %133, %137 : vector<16x128xf32>
    %c127_i32_84 = arith.constant 127 : i32
    %139 = tpu.dynamic_rotate %127 by %c127_i32_84 dim 1 : vector<16x128xf32>, i32 -> vector<16x128xf32>
    %c1_85 = arith.constant 1 : index
    %c5_86 = arith.constant 5 : index
    %c0_87 = arith.constant 0 : index
    %140 = vector.load %arg2[%c1_85, %c5_86, %c0_87] : memref<4x9x128xf32, #tpu.memory_space<vmem>>, vector<1x1x128xf32>
    %141 = vector.shape_cast %140 : vector<1x1x128xf32> to vector<1x128xf32>
    %142 = vector.broadcast %141 : vector<1x128xf32> to vector<16x128xf32>
    %143 = arith.mulf %139, %142 : vector<16x128xf32>
    %144 = arith.addf %138, %143 : vector<16x128xf32>
    %c2_88 = arith.constant 2 : index
    %c0_89 = arith.constant 0 : index
    %145 = vector.load %arg5[%c2_88, %c0_89] : memref<18x128xf32, #tpu.memory_space<vmem>>, vector<16x128xf32>
    %c1_i32_90 = arith.constant 1 : i32
    %146 = tpu.dynamic_rotate %145 by %c1_i32_90 dim 1 : vector<16x128xf32>, i32 -> vector<16x128xf32>
    %c1_91 = arith.constant 1 : index
    %c6_92 = arith.constant 6 : index
    %c0_93 = arith.constant 0 : index
    %147 = vector.load %arg2[%c1_91, %c6_92, %c0_93] : memref<4x9x128xf32, #tpu.memory_space<vmem>>, vector<1x1x128xf32>
    %148 = vector.shape_cast %147 : vector<1x1x128xf32> to vector<1x128xf32>
    %149 = vector.broadcast %148 : vector<1x128xf32> to vector<16x128xf32>
    %150 = arith.mulf %146, %149 : vector<16x128xf32>
    %151 = arith.addf %144, %150 : vector<16x128xf32>
    %c1_94 = arith.constant 1 : index
    %c7_95 = arith.constant 7 : index
    %c0_96 = arith.constant 0 : index
    %152 = vector.load %arg2[%c1_94, %c7_95, %c0_96] : memref<4x9x128xf32, #tpu.memory_space<vmem>>, vector<1x1x128xf32>
    %153 = vector.shape_cast %152 : vector<1x1x128xf32> to vector<1x128xf32>
    %154 = vector.broadcast %153 : vector<1x128xf32> to vector<16x128xf32>
    %155 = arith.mulf %145, %154 : vector<16x128xf32>
    %156 = arith.addf %151, %155 : vector<16x128xf32>
    %c127_i32_97 = arith.constant 127 : i32
    %157 = tpu.dynamic_rotate %145 by %c127_i32_97 dim 1 : vector<16x128xf32>, i32 -> vector<16x128xf32>
    %c1_98 = arith.constant 1 : index
    %c8_99 = arith.constant 8 : index
    %c0_100 = arith.constant 0 : index
    %158 = vector.load %arg2[%c1_98, %c8_99, %c0_100] : memref<4x9x128xf32, #tpu.memory_space<vmem>>, vector<1x1x128xf32>
    %159 = vector.shape_cast %158 : vector<1x1x128xf32> to vector<1x128xf32>
    %160 = vector.broadcast %159 : vector<1x128xf32> to vector<16x128xf32>
    %161 = arith.mulf %157, %160 : vector<16x128xf32>
    %162 = arith.addf %156, %161 : vector<16x128xf32>
    %c1_101 = arith.constant 1 : index
    %c0_102 = arith.constant 0 : index
    %c0_103 = arith.constant 0 : index
    %163 = vector.load %arg3[%c1_101, %c0_102, %c0_103] : memref<4x8x128xf32, #tpu.memory_space<vmem>>, vector<1x1x128xf32>
    %164 = vector.shape_cast %163 : vector<1x1x128xf32> to vector<1x128xf32>
    %165 = vector.broadcast %164 : vector<1x128xf32> to vector<16x128xf32>
    %166 = arith.mulf %162, %165 : vector<16x128xf32>
    %c16_i32_104 = arith.constant 16 : i32
    %167 = tpu.dynamic_rotate %162 by %c16_i32_104 dim 1 : vector<16x128xf32>, i32 -> vector<16x128xf32>
    %c1_105 = arith.constant 1 : index
    %c1_106 = arith.constant 1 : index
    %c0_107 = arith.constant 0 : index
    %168 = vector.load %arg3[%c1_105, %c1_106, %c0_107] : memref<4x8x128xf32, #tpu.memory_space<vmem>>, vector<1x1x128xf32>
    %169 = vector.shape_cast %168 : vector<1x1x128xf32> to vector<1x128xf32>
    %170 = vector.broadcast %169 : vector<1x128xf32> to vector<16x128xf32>
    %171 = arith.mulf %167, %170 : vector<16x128xf32>
    %172 = arith.addf %166, %171 : vector<16x128xf32>
    %c32_i32_108 = arith.constant 32 : i32
    %173 = tpu.dynamic_rotate %162 by %c32_i32_108 dim 1 : vector<16x128xf32>, i32 -> vector<16x128xf32>
    %c1_109 = arith.constant 1 : index
    %c2_110 = arith.constant 2 : index
    %c0_111 = arith.constant 0 : index
    %174 = vector.load %arg3[%c1_109, %c2_110, %c0_111] : memref<4x8x128xf32, #tpu.memory_space<vmem>>, vector<1x1x128xf32>
    %175 = vector.shape_cast %174 : vector<1x1x128xf32> to vector<1x128xf32>
    %176 = vector.broadcast %175 : vector<1x128xf32> to vector<16x128xf32>
    %177 = arith.mulf %173, %176 : vector<16x128xf32>
    %178 = arith.addf %172, %177 : vector<16x128xf32>
    %c48_i32_112 = arith.constant 48 : i32
    %179 = tpu.dynamic_rotate %162 by %c48_i32_112 dim 1 : vector<16x128xf32>, i32 -> vector<16x128xf32>
    %c1_113 = arith.constant 1 : index
    %c3_114 = arith.constant 3 : index
    %c0_115 = arith.constant 0 : index
    %180 = vector.load %arg3[%c1_113, %c3_114, %c0_115] : memref<4x8x128xf32, #tpu.memory_space<vmem>>, vector<1x1x128xf32>
    %181 = vector.shape_cast %180 : vector<1x1x128xf32> to vector<1x128xf32>
    %182 = vector.broadcast %181 : vector<1x128xf32> to vector<16x128xf32>
    %183 = arith.mulf %179, %182 : vector<16x128xf32>
    %184 = arith.addf %178, %183 : vector<16x128xf32>
    %c64_i32_116 = arith.constant 64 : i32
    %185 = tpu.dynamic_rotate %162 by %c64_i32_116 dim 1 : vector<16x128xf32>, i32 -> vector<16x128xf32>
    %c1_117 = arith.constant 1 : index
    %c4_118 = arith.constant 4 : index
    %c0_119 = arith.constant 0 : index
    %186 = vector.load %arg3[%c1_117, %c4_118, %c0_119] : memref<4x8x128xf32, #tpu.memory_space<vmem>>, vector<1x1x128xf32>
    %187 = vector.shape_cast %186 : vector<1x1x128xf32> to vector<1x128xf32>
    %188 = vector.broadcast %187 : vector<1x128xf32> to vector<16x128xf32>
    %189 = arith.mulf %185, %188 : vector<16x128xf32>
    %190 = arith.addf %184, %189 : vector<16x128xf32>
    %c80_i32_120 = arith.constant 80 : i32
    %191 = tpu.dynamic_rotate %162 by %c80_i32_120 dim 1 : vector<16x128xf32>, i32 -> vector<16x128xf32>
    %c1_121 = arith.constant 1 : index
    %c5_122 = arith.constant 5 : index
    %c0_123 = arith.constant 0 : index
    %192 = vector.load %arg3[%c1_121, %c5_122, %c0_123] : memref<4x8x128xf32, #tpu.memory_space<vmem>>, vector<1x1x128xf32>
    %193 = vector.shape_cast %192 : vector<1x1x128xf32> to vector<1x128xf32>
    %194 = vector.broadcast %193 : vector<1x128xf32> to vector<16x128xf32>
    %195 = arith.mulf %191, %194 : vector<16x128xf32>
    %196 = arith.addf %190, %195 : vector<16x128xf32>
    %c96_i32_124 = arith.constant 96 : i32
    %197 = tpu.dynamic_rotate %162 by %c96_i32_124 dim 1 : vector<16x128xf32>, i32 -> vector<16x128xf32>
    %c1_125 = arith.constant 1 : index
    %c6_126 = arith.constant 6 : index
    %c0_127 = arith.constant 0 : index
    %198 = vector.load %arg3[%c1_125, %c6_126, %c0_127] : memref<4x8x128xf32, #tpu.memory_space<vmem>>, vector<1x1x128xf32>
    %199 = vector.shape_cast %198 : vector<1x1x128xf32> to vector<1x128xf32>
    %200 = vector.broadcast %199 : vector<1x128xf32> to vector<16x128xf32>
    %201 = arith.mulf %197, %200 : vector<16x128xf32>
    %202 = arith.addf %196, %201 : vector<16x128xf32>
    %c112_i32_128 = arith.constant 112 : i32
    %203 = tpu.dynamic_rotate %162 by %c112_i32_128 dim 1 : vector<16x128xf32>, i32 -> vector<16x128xf32>
    %c1_129 = arith.constant 1 : index
    %c7_130 = arith.constant 7 : index
    %c0_131 = arith.constant 0 : index
    %204 = vector.load %arg3[%c1_129, %c7_130, %c0_131] : memref<4x8x128xf32, #tpu.memory_space<vmem>>, vector<1x1x128xf32>
    %205 = vector.shape_cast %204 : vector<1x1x128xf32> to vector<1x128xf32>
    %206 = vector.broadcast %205 : vector<1x128xf32> to vector<16x128xf32>
    %207 = arith.mulf %203, %206 : vector<16x128xf32>
    %208 = arith.addf %202, %207 : vector<16x128xf32>
    %cst_132 = arith.constant 0.000000e+00 : f32
    %cst_133 = arith.constant 6.000000e+00 : f32
    %209 = vector.broadcast %cst_132 : f32 to vector<16x128xf32>
    %210 = arith.maximumf %209, %208 : vector<16x128xf32>
    %211 = vector.broadcast %cst_133 : f32 to vector<16x128xf32>
    %212 = arith.minimumf %211, %210 : vector<16x128xf32>
    %c1_134 = arith.constant 1 : index
    %c0_135 = arith.constant 0 : index
    %213 = vector.load %arg5[%c1_134, %c0_135] : memref<18x128xf32, #tpu.memory_space<vmem>>, vector<16x128xf32>
    tpu.vector_store %arg5[%c1_134, %c0_135], %212 {strides = array<i32>} : memref<18x128xf32, #tpu.memory_space<vmem>>, vector<16x128xf32>,
    %c0_136 = arith.constant 0 : index
    %c0_137 = arith.constant 0 : index
    %214 = vector.load %arg5[%c0_136, %c0_137] : memref<18x128xf32, #tpu.memory_space<vmem>>, vector<16x128xf32>
    %c1_i32_138 = arith.constant 1 : i32
    %215 = tpu.dynamic_rotate %214 by %c1_i32_138 dim 1 : vector<16x128xf32>, i32 -> vector<16x128xf32>
    %c2_139 = arith.constant 2 : index
    %c0_140 = arith.constant 0 : index
    %c0_141 = arith.constant 0 : index
    %216 = vector.load %arg2[%c2_139, %c0_140, %c0_141] : memref<4x9x128xf32, #tpu.memory_space<vmem>>, vector<1x1x128xf32>
    %217 = vector.shape_cast %216 : vector<1x1x128xf32> to vector<1x128xf32>
    %218 = vector.broadcast %217 : vector<1x128xf32> to vector<16x128xf32>
    %219 = arith.mulf %215, %218 : vector<16x128xf32>
    %c2_142 = arith.constant 2 : index
    %c1_143 = arith.constant 1 : index
    %c0_144 = arith.constant 0 : index
    %220 = vector.load %arg2[%c2_142, %c1_143, %c0_144] : memref<4x9x128xf32, #tpu.memory_space<vmem>>, vector<1x1x128xf32>
    %221 = vector.shape_cast %220 : vector<1x1x128xf32> to vector<1x128xf32>
    %222 = vector.broadcast %221 : vector<1x128xf32> to vector<16x128xf32>
    %223 = arith.mulf %214, %222 : vector<16x128xf32>
    %224 = arith.addf %219, %223 : vector<16x128xf32>
    %c127_i32_145 = arith.constant 127 : i32
    %225 = tpu.dynamic_rotate %214 by %c127_i32_145 dim 1 : vector<16x128xf32>, i32 -> vector<16x128xf32>
    %c2_146 = arith.constant 2 : index
    %c2_147 = arith.constant 2 : index
    %c0_148 = arith.constant 0 : index
    %226 = vector.load %arg2[%c2_146, %c2_147, %c0_148] : memref<4x9x128xf32, #tpu.memory_space<vmem>>, vector<1x1x128xf32>
    %227 = vector.shape_cast %226 : vector<1x1x128xf32> to vector<1x128xf32>
    %228 = vector.broadcast %227 : vector<1x128xf32> to vector<16x128xf32>
    %229 = arith.mulf %225, %228 : vector<16x128xf32>
    %230 = arith.addf %224, %229 : vector<16x128xf32>
    %c1_149 = arith.constant 1 : index
    %c0_150 = arith.constant 0 : index
    %231 = vector.load %arg5[%c1_149, %c0_150] : memref<18x128xf32, #tpu.memory_space<vmem>>, vector<16x128xf32>
    %c1_i32_151 = arith.constant 1 : i32
    %232 = tpu.dynamic_rotate %231 by %c1_i32_151 dim 1 : vector<16x128xf32>, i32 -> vector<16x128xf32>
    %c2_152 = arith.constant 2 : index
    %c3_153 = arith.constant 3 : index
    %c0_154 = arith.constant 0 : index
    %233 = vector.load %arg2[%c2_152, %c3_153, %c0_154] : memref<4x9x128xf32, #tpu.memory_space<vmem>>, vector<1x1x128xf32>
    %234 = vector.shape_cast %233 : vector<1x1x128xf32> to vector<1x128xf32>
    %235 = vector.broadcast %234 : vector<1x128xf32> to vector<16x128xf32>
    %236 = arith.mulf %232, %235 : vector<16x128xf32>
    %237 = arith.addf %230, %236 : vector<16x128xf32>
    %c2_155 = arith.constant 2 : index
    %c4_156 = arith.constant 4 : index
    %c0_157 = arith.constant 0 : index
    %238 = vector.load %arg2[%c2_155, %c4_156, %c0_157] : memref<4x9x128xf32, #tpu.memory_space<vmem>>, vector<1x1x128xf32>
    %239 = vector.shape_cast %238 : vector<1x1x128xf32> to vector<1x128xf32>
    %240 = vector.broadcast %239 : vector<1x128xf32> to vector<16x128xf32>
    %241 = arith.mulf %231, %240 : vector<16x128xf32>
    %242 = arith.addf %237, %241 : vector<16x128xf32>
    %c127_i32_158 = arith.constant 127 : i32
    %243 = tpu.dynamic_rotate %231 by %c127_i32_158 dim 1 : vector<16x128xf32>, i32 -> vector<16x128xf32>
    %c2_159 = arith.constant 2 : index
    %c5_160 = arith.constant 5 : index
    %c0_161 = arith.constant 0 : index
    %244 = vector.load %arg2[%c2_159, %c5_160, %c0_161] : memref<4x9x128xf32, #tpu.memory_space<vmem>>, vector<1x1x128xf32>
    %245 = vector.shape_cast %244 : vector<1x1x128xf32> to vector<1x128xf32>
    %246 = vector.broadcast %245 : vector<1x128xf32> to vector<16x128xf32>
    %247 = arith.mulf %243, %246 : vector<16x128xf32>
    %248 = arith.addf %242, %247 : vector<16x128xf32>
    %c2_162 = arith.constant 2 : index
    %c0_163 = arith.constant 0 : index
    %249 = vector.load %arg5[%c2_162, %c0_163] : memref<18x128xf32, #tpu.memory_space<vmem>>, vector<16x128xf32>
    %c1_i32_164 = arith.constant 1 : i32
    %250 = tpu.dynamic_rotate %249 by %c1_i32_164 dim 1 : vector<16x128xf32>, i32 -> vector<16x128xf32>
    %c2_165 = arith.constant 2 : index
    %c6_166 = arith.constant 6 : index
    %c0_167 = arith.constant 0 : index
    %251 = vector.load %arg2[%c2_165, %c6_166, %c0_167] : memref<4x9x128xf32, #tpu.memory_space<vmem>>, vector<1x1x128xf32>
    %252 = vector.shape_cast %251 : vector<1x1x128xf32> to vector<1x128xf32>
    %253 = vector.broadcast %252 : vector<1x128xf32> to vector<16x128xf32>
    %254 = arith.mulf %250, %253 : vector<16x128xf32>
    %255 = arith.addf %248, %254 : vector<16x128xf32>
    %c2_168 = arith.constant 2 : index
    %c7_169 = arith.constant 7 : index
    %c0_170 = arith.constant 0 : index
    %256 = vector.load %arg2[%c2_168, %c7_169, %c0_170] : memref<4x9x128xf32, #tpu.memory_space<vmem>>, vector<1x1x128xf32>
    %257 = vector.shape_cast %256 : vector<1x1x128xf32> to vector<1x128xf32>
    %258 = vector.broadcast %257 : vector<1x128xf32> to vector<16x128xf32>
    %259 = arith.mulf %249, %258 : vector<16x128xf32>
    %260 = arith.addf %255, %259 : vector<16x128xf32>
    %c127_i32_171 = arith.constant 127 : i32
    %261 = tpu.dynamic_rotate %249 by %c127_i32_171 dim 1 : vector<16x128xf32>, i32 -> vector<16x128xf32>
    %c2_172 = arith.constant 2 : index
    %c8_173 = arith.constant 8 : index
    %c0_174 = arith.constant 0 : index
    %262 = vector.load %arg2[%c2_172, %c8_173, %c0_174] : memref<4x9x128xf32, #tpu.memory_space<vmem>>, vector<1x1x128xf32>
    %263 = vector.shape_cast %262 : vector<1x1x128xf32> to vector<1x128xf32>
    %264 = vector.broadcast %263 : vector<1x128xf32> to vector<16x128xf32>
    %265 = arith.mulf %261, %264 : vector<16x128xf32>
    %266 = arith.addf %260, %265 : vector<16x128xf32>
    %c2_175 = arith.constant 2 : index
    %c0_176 = arith.constant 0 : index
    %c0_177 = arith.constant 0 : index
    %267 = vector.load %arg3[%c2_175, %c0_176, %c0_177] : memref<4x8x128xf32, #tpu.memory_space<vmem>>, vector<1x1x128xf32>
    %268 = vector.shape_cast %267 : vector<1x1x128xf32> to vector<1x128xf32>
    %269 = vector.broadcast %268 : vector<1x128xf32> to vector<16x128xf32>
    %270 = arith.mulf %266, %269 : vector<16x128xf32>
    %c16_i32_178 = arith.constant 16 : i32
    %271 = tpu.dynamic_rotate %266 by %c16_i32_178 dim 1 : vector<16x128xf32>, i32 -> vector<16x128xf32>
    %c2_179 = arith.constant 2 : index
    %c1_180 = arith.constant 1 : index
    %c0_181 = arith.constant 0 : index
    %272 = vector.load %arg3[%c2_179, %c1_180, %c0_181] : memref<4x8x128xf32, #tpu.memory_space<vmem>>, vector<1x1x128xf32>
    %273 = vector.shape_cast %272 : vector<1x1x128xf32> to vector<1x128xf32>
    %274 = vector.broadcast %273 : vector<1x128xf32> to vector<16x128xf32>
    %275 = arith.mulf %271, %274 : vector<16x128xf32>
    %276 = arith.addf %270, %275 : vector<16x128xf32>
    %c32_i32_182 = arith.constant 32 : i32
    %277 = tpu.dynamic_rotate %266 by %c32_i32_182 dim 1 : vector<16x128xf32>, i32 -> vector<16x128xf32>
    %c2_183 = arith.constant 2 : index
    %c2_184 = arith.constant 2 : index
    %c0_185 = arith.constant 0 : index
    %278 = vector.load %arg3[%c2_183, %c2_184, %c0_185] : memref<4x8x128xf32, #tpu.memory_space<vmem>>, vector<1x1x128xf32>
    %279 = vector.shape_cast %278 : vector<1x1x128xf32> to vector<1x128xf32>
    %280 = vector.broadcast %279 : vector<1x128xf32> to vector<16x128xf32>
    %281 = arith.mulf %277, %280 : vector<16x128xf32>
    %282 = arith.addf %276, %281 : vector<16x128xf32>
    %c48_i32_186 = arith.constant 48 : i32
    %283 = tpu.dynamic_rotate %266 by %c48_i32_186 dim 1 : vector<16x128xf32>, i32 -> vector<16x128xf32>
    %c2_187 = arith.constant 2 : index
    %c3_188 = arith.constant 3 : index
    %c0_189 = arith.constant 0 : index
    %284 = vector.load %arg3[%c2_187, %c3_188, %c0_189] : memref<4x8x128xf32, #tpu.memory_space<vmem>>, vector<1x1x128xf32>
    %285 = vector.shape_cast %284 : vector<1x1x128xf32> to vector<1x128xf32>
    %286 = vector.broadcast %285 : vector<1x128xf32> to vector<16x128xf32>
    %287 = arith.mulf %283, %286 : vector<16x128xf32>
    %288 = arith.addf %282, %287 : vector<16x128xf32>
    %c64_i32_190 = arith.constant 64 : i32
    %289 = tpu.dynamic_rotate %266 by %c64_i32_190 dim 1 : vector<16x128xf32>, i32 -> vector<16x128xf32>
    %c2_191 = arith.constant 2 : index
    %c4_192 = arith.constant 4 : index
    %c0_193 = arith.constant 0 : index
    %290 = vector.load %arg3[%c2_191, %c4_192, %c0_193] : memref<4x8x128xf32, #tpu.memory_space<vmem>>, vector<1x1x128xf32>
    %291 = vector.shape_cast %290 : vector<1x1x128xf32> to vector<1x128xf32>
    %292 = vector.broadcast %291 : vector<1x128xf32> to vector<16x128xf32>
    %293 = arith.mulf %289, %292 : vector<16x128xf32>
    %294 = arith.addf %288, %293 : vector<16x128xf32>
    %c80_i32_194 = arith.constant 80 : i32
    %295 = tpu.dynamic_rotate %266 by %c80_i32_194 dim 1 : vector<16x128xf32>, i32 -> vector<16x128xf32>
    %c2_195 = arith.constant 2 : index
    %c5_196 = arith.constant 5 : index
    %c0_197 = arith.constant 0 : index
    %296 = vector.load %arg3[%c2_195, %c5_196, %c0_197] : memref<4x8x128xf32, #tpu.memory_space<vmem>>, vector<1x1x128xf32>
    %297 = vector.shape_cast %296 : vector<1x1x128xf32> to vector<1x128xf32>
    %298 = vector.broadcast %297 : vector<1x128xf32> to vector<16x128xf32>
    %299 = arith.mulf %295, %298 : vector<16x128xf32>
    %300 = arith.addf %294, %299 : vector<16x128xf32>
    %c96_i32_198 = arith.constant 96 : i32
    %301 = tpu.dynamic_rotate %266 by %c96_i32_198 dim 1 : vector<16x128xf32>, i32 -> vector<16x128xf32>
    %c2_199 = arith.constant 2 : index
    %c6_200 = arith.constant 6 : index
    %c0_201 = arith.constant 0 : index
    %302 = vector.load %arg3[%c2_199, %c6_200, %c0_201] : memref<4x8x128xf32, #tpu.memory_space<vmem>>, vector<1x1x128xf32>
    %303 = vector.shape_cast %302 : vector<1x1x128xf32> to vector<1x128xf32>
    %304 = vector.broadcast %303 : vector<1x128xf32> to vector<16x128xf32>
    %305 = arith.mulf %301, %304 : vector<16x128xf32>
    %306 = arith.addf %300, %305 : vector<16x128xf32>
    %c112_i32_202 = arith.constant 112 : i32
    %307 = tpu.dynamic_rotate %266 by %c112_i32_202 dim 1 : vector<16x128xf32>, i32 -> vector<16x128xf32>
    %c2_203 = arith.constant 2 : index
    %c7_204 = arith.constant 7 : index
    %c0_205 = arith.constant 0 : index
    %308 = vector.load %arg3[%c2_203, %c7_204, %c0_205] : memref<4x8x128xf32, #tpu.memory_space<vmem>>, vector<1x1x128xf32>
    %309 = vector.shape_cast %308 : vector<1x1x128xf32> to vector<1x128xf32>
    %310 = vector.broadcast %309 : vector<1x128xf32> to vector<16x128xf32>
    %311 = arith.mulf %307, %310 : vector<16x128xf32>
    %312 = arith.addf %306, %311 : vector<16x128xf32>
    %cst_206 = arith.constant 0.000000e+00 : f32
    %cst_207 = arith.constant 6.000000e+00 : f32
    %313 = vector.broadcast %cst_206 : f32 to vector<16x128xf32>
    %314 = arith.maximumf %313, %312 : vector<16x128xf32>
    %315 = vector.broadcast %cst_207 : f32 to vector<16x128xf32>
    %316 = arith.minimumf %315, %314 : vector<16x128xf32>
    %c1_208 = arith.constant 1 : index
    %c0_209 = arith.constant 0 : index
    %317 = vector.load %arg5[%c1_208, %c0_209] : memref<18x128xf32, #tpu.memory_space<vmem>>, vector<16x128xf32>
    tpu.vector_store %arg5[%c1_208, %c0_209], %316 {strides = array<i32>} : memref<18x128xf32, #tpu.memory_space<vmem>>, vector<16x128xf32>,
    %c0_210 = arith.constant 0 : index
    %c0_211 = arith.constant 0 : index
    %318 = vector.load %arg5[%c0_210, %c0_211] : memref<18x128xf32, #tpu.memory_space<vmem>>, vector<16x128xf32>
    %c1_i32_212 = arith.constant 1 : i32
    %319 = tpu.dynamic_rotate %318 by %c1_i32_212 dim 1 : vector<16x128xf32>, i32 -> vector<16x128xf32>
    %c3_213 = arith.constant 3 : index
    %c0_214 = arith.constant 0 : index
    %c0_215 = arith.constant 0 : index
    %320 = vector.load %arg2[%c3_213, %c0_214, %c0_215] : memref<4x9x128xf32, #tpu.memory_space<vmem>>, vector<1x1x128xf32>
    %321 = vector.shape_cast %320 : vector<1x1x128xf32> to vector<1x128xf32>
    %322 = vector.broadcast %321 : vector<1x128xf32> to vector<16x128xf32>
    %323 = arith.mulf %319, %322 : vector<16x128xf32>
    %c3_216 = arith.constant 3 : index
    %c1_217 = arith.constant 1 : index
    %c0_218 = arith.constant 0 : index
    %324 = vector.load %arg2[%c3_216, %c1_217, %c0_218] : memref<4x9x128xf32, #tpu.memory_space<vmem>>, vector<1x1x128xf32>
    %325 = vector.shape_cast %324 : vector<1x1x128xf32> to vector<1x128xf32>
    %326 = vector.broadcast %325 : vector<1x128xf32> to vector<16x128xf32>
    %327 = arith.mulf %318, %326 : vector<16x128xf32>
    %328 = arith.addf %323, %327 : vector<16x128xf32>
    %c127_i32_219 = arith.constant 127 : i32
    %329 = tpu.dynamic_rotate %318 by %c127_i32_219 dim 1 : vector<16x128xf32>, i32 -> vector<16x128xf32>
    %c3_220 = arith.constant 3 : index
    %c2_221 = arith.constant 2 : index
    %c0_222 = arith.constant 0 : index
    %330 = vector.load %arg2[%c3_220, %c2_221, %c0_222] : memref<4x9x128xf32, #tpu.memory_space<vmem>>, vector<1x1x128xf32>
    %331 = vector.shape_cast %330 : vector<1x1x128xf32> to vector<1x128xf32>
    %332 = vector.broadcast %331 : vector<1x128xf32> to vector<16x128xf32>
    %333 = arith.mulf %329, %332 : vector<16x128xf32>
    %334 = arith.addf %328, %333 : vector<16x128xf32>
    %c1_223 = arith.constant 1 : index
    %c0_224 = arith.constant 0 : index
    %335 = vector.load %arg5[%c1_223, %c0_224] : memref<18x128xf32, #tpu.memory_space<vmem>>, vector<16x128xf32>
    %c1_i32_225 = arith.constant 1 : i32
    %336 = tpu.dynamic_rotate %335 by %c1_i32_225 dim 1 : vector<16x128xf32>, i32 -> vector<16x128xf32>
    %c3_226 = arith.constant 3 : index
    %c3_227 = arith.constant 3 : index
    %c0_228 = arith.constant 0 : index
    %337 = vector.load %arg2[%c3_226, %c3_227, %c0_228] : memref<4x9x128xf32, #tpu.memory_space<vmem>>, vector<1x1x128xf32>
    %338 = vector.shape_cast %337 : vector<1x1x128xf32> to vector<1x128xf32>
    %339 = vector.broadcast %338 : vector<1x128xf32> to vector<16x128xf32>
    %340 = arith.mulf %336, %339 : vector<16x128xf32>
    %341 = arith.addf %334, %340 : vector<16x128xf32>
    %c3_229 = arith.constant 3 : index
    %c4_230 = arith.constant 4 : index
    %c0_231 = arith.constant 0 : index
    %342 = vector.load %arg2[%c3_229, %c4_230, %c0_231] : memref<4x9x128xf32, #tpu.memory_space<vmem>>, vector<1x1x128xf32>
    %343 = vector.shape_cast %342 : vector<1x1x128xf32> to vector<1x128xf32>
    %344 = vector.broadcast %343 : vector<1x128xf32> to vector<16x128xf32>
    %345 = arith.mulf %335, %344 : vector<16x128xf32>
    %346 = arith.addf %341, %345 : vector<16x128xf32>
    %c127_i32_232 = arith.constant 127 : i32
    %347 = tpu.dynamic_rotate %335 by %c127_i32_232 dim 1 : vector<16x128xf32>, i32 -> vector<16x128xf32>
    %c3_233 = arith.constant 3 : index
    %c5_234 = arith.constant 5 : index
    %c0_235 = arith.constant 0 : index
    %348 = vector.load %arg2[%c3_233, %c5_234, %c0_235] : memref<4x9x128xf32, #tpu.memory_space<vmem>>, vector<1x1x128xf32>
    %349 = vector.shape_cast %348 : vector<1x1x128xf32> to vector<1x128xf32>
    %350 = vector.broadcast %349 : vector<1x128xf32> to vector<16x128xf32>
    %351 = arith.mulf %347, %350 : vector<16x128xf32>
    %352 = arith.addf %346, %351 : vector<16x128xf32>
    %c2_236 = arith.constant 2 : index
    %c0_237 = arith.constant 0 : index
    %353 = vector.load %arg5[%c2_236, %c0_237] : memref<18x128xf32, #tpu.memory_space<vmem>>, vector<16x128xf32>
    %c1_i32_238 = arith.constant 1 : i32
    %354 = tpu.dynamic_rotate %353 by %c1_i32_238 dim 1 : vector<16x128xf32>, i32 -> vector<16x128xf32>
    %c3_239 = arith.constant 3 : index
    %c6_240 = arith.constant 6 : index
    %c0_241 = arith.constant 0 : index
    %355 = vector.load %arg2[%c3_239, %c6_240, %c0_241] : memref<4x9x128xf32, #tpu.memory_space<vmem>>, vector<1x1x128xf32>
    %356 = vector.shape_cast %355 : vector<1x1x128xf32> to vector<1x128xf32>
    %357 = vector.broadcast %356 : vector<1x128xf32> to vector<16x128xf32>
    %358 = arith.mulf %354, %357 : vector<16x128xf32>
    %359 = arith.addf %352, %358 : vector<16x128xf32>
    %c3_242 = arith.constant 3 : index
    %c7_243 = arith.constant 7 : index
    %c0_244 = arith.constant 0 : index
    %360 = vector.load %arg2[%c3_242, %c7_243, %c0_244] : memref<4x9x128xf32, #tpu.memory_space<vmem>>, vector<1x1x128xf32>
    %361 = vector.shape_cast %360 : vector<1x1x128xf32> to vector<1x128xf32>
    %362 = vector.broadcast %361 : vector<1x128xf32> to vector<16x128xf32>
    %363 = arith.mulf %353, %362 : vector<16x128xf32>
    %364 = arith.addf %359, %363 : vector<16x128xf32>
    %c127_i32_245 = arith.constant 127 : i32
    %365 = tpu.dynamic_rotate %353 by %c127_i32_245 dim 1 : vector<16x128xf32>, i32 -> vector<16x128xf32>
    %c3_246 = arith.constant 3 : index
    %c8_247 = arith.constant 8 : index
    %c0_248 = arith.constant 0 : index
    %366 = vector.load %arg2[%c3_246, %c8_247, %c0_248] : memref<4x9x128xf32, #tpu.memory_space<vmem>>, vector<1x1x128xf32>
    %367 = vector.shape_cast %366 : vector<1x1x128xf32> to vector<1x128xf32>
    %368 = vector.broadcast %367 : vector<1x128xf32> to vector<16x128xf32>
    %369 = arith.mulf %365, %368 : vector<16x128xf32>
    %370 = arith.addf %364, %369 : vector<16x128xf32>
    %c3_249 = arith.constant 3 : index
    %c0_250 = arith.constant 0 : index
    %c0_251 = arith.constant 0 : index
    %371 = vector.load %arg3[%c3_249, %c0_250, %c0_251] : memref<4x8x128xf32, #tpu.memory_space<vmem>>, vector<1x1x128xf32>
    %372 = vector.shape_cast %371 : vector<1x1x128xf32> to vector<1x128xf32>
    %373 = vector.broadcast %372 : vector<1x128xf32> to vector<16x128xf32>
    %374 = arith.mulf %370, %373 : vector<16x128xf32>
    %c16_i32_252 = arith.constant 16 : i32
    %375 = tpu.dynamic_rotate %370 by %c16_i32_252 dim 1 : vector<16x128xf32>, i32 -> vector<16x128xf32>
    %c3_253 = arith.constant 3 : index
    %c1_254 = arith.constant 1 : index
    %c0_255 = arith.constant 0 : index
    %376 = vector.load %arg3[%c3_253, %c1_254, %c0_255] : memref<4x8x128xf32, #tpu.memory_space<vmem>>, vector<1x1x128xf32>
    %377 = vector.shape_cast %376 : vector<1x1x128xf32> to vector<1x128xf32>
    %378 = vector.broadcast %377 : vector<1x128xf32> to vector<16x128xf32>
    %379 = arith.mulf %375, %378 : vector<16x128xf32>
    %380 = arith.addf %374, %379 : vector<16x128xf32>
    %c32_i32_256 = arith.constant 32 : i32
    %381 = tpu.dynamic_rotate %370 by %c32_i32_256 dim 1 : vector<16x128xf32>, i32 -> vector<16x128xf32>
    %c3_257 = arith.constant 3 : index
    %c2_258 = arith.constant 2 : index
    %c0_259 = arith.constant 0 : index
    %382 = vector.load %arg3[%c3_257, %c2_258, %c0_259] : memref<4x8x128xf32, #tpu.memory_space<vmem>>, vector<1x1x128xf32>
    %383 = vector.shape_cast %382 : vector<1x1x128xf32> to vector<1x128xf32>
    %384 = vector.broadcast %383 : vector<1x128xf32> to vector<16x128xf32>
    %385 = arith.mulf %381, %384 : vector<16x128xf32>
    %386 = arith.addf %380, %385 : vector<16x128xf32>
    %c48_i32_260 = arith.constant 48 : i32
    %387 = tpu.dynamic_rotate %370 by %c48_i32_260 dim 1 : vector<16x128xf32>, i32 -> vector<16x128xf32>
    %c3_261 = arith.constant 3 : index
    %c3_262 = arith.constant 3 : index
    %c0_263 = arith.constant 0 : index
    %388 = vector.load %arg3[%c3_261, %c3_262, %c0_263] : memref<4x8x128xf32, #tpu.memory_space<vmem>>, vector<1x1x128xf32>
    %389 = vector.shape_cast %388 : vector<1x1x128xf32> to vector<1x128xf32>
    %390 = vector.broadcast %389 : vector<1x128xf32> to vector<16x128xf32>
    %391 = arith.mulf %387, %390 : vector<16x128xf32>
    %392 = arith.addf %386, %391 : vector<16x128xf32>
    %c64_i32_264 = arith.constant 64 : i32
    %393 = tpu.dynamic_rotate %370 by %c64_i32_264 dim 1 : vector<16x128xf32>, i32 -> vector<16x128xf32>
    %c3_265 = arith.constant 3 : index
    %c4_266 = arith.constant 4 : index
    %c0_267 = arith.constant 0 : index
    %394 = vector.load %arg3[%c3_265, %c4_266, %c0_267] : memref<4x8x128xf32, #tpu.memory_space<vmem>>, vector<1x1x128xf32>
    %395 = vector.shape_cast %394 : vector<1x1x128xf32> to vector<1x128xf32>
    %396 = vector.broadcast %395 : vector<1x128xf32> to vector<16x128xf32>
    %397 = arith.mulf %393, %396 : vector<16x128xf32>
    %398 = arith.addf %392, %397 : vector<16x128xf32>
    %c80_i32_268 = arith.constant 80 : i32
    %399 = tpu.dynamic_rotate %370 by %c80_i32_268 dim 1 : vector<16x128xf32>, i32 -> vector<16x128xf32>
    %c3_269 = arith.constant 3 : index
    %c5_270 = arith.constant 5 : index
    %c0_271 = arith.constant 0 : index
    %400 = vector.load %arg3[%c3_269, %c5_270, %c0_271] : memref<4x8x128xf32, #tpu.memory_space<vmem>>, vector<1x1x128xf32>
    %401 = vector.shape_cast %400 : vector<1x1x128xf32> to vector<1x128xf32>
    %402 = vector.broadcast %401 : vector<1x128xf32> to vector<16x128xf32>
    %403 = arith.mulf %399, %402 : vector<16x128xf32>
    %404 = arith.addf %398, %403 : vector<16x128xf32>
    %c96_i32_272 = arith.constant 96 : i32
    %405 = tpu.dynamic_rotate %370 by %c96_i32_272 dim 1 : vector<16x128xf32>, i32 -> vector<16x128xf32>
    %c3_273 = arith.constant 3 : index
    %c6_274 = arith.constant 6 : index
    %c0_275 = arith.constant 0 : index
    %406 = vector.load %arg3[%c3_273, %c6_274, %c0_275] : memref<4x8x128xf32, #tpu.memory_space<vmem>>, vector<1x1x128xf32>
    %407 = vector.shape_cast %406 : vector<1x1x128xf32> to vector<1x128xf32>
    %408 = vector.broadcast %407 : vector<1x128xf32> to vector<16x128xf32>
    %409 = arith.mulf %405, %408 : vector<16x128xf32>
    %410 = arith.addf %404, %409 : vector<16x128xf32>
    %c112_i32_276 = arith.constant 112 : i32
    %411 = tpu.dynamic_rotate %370 by %c112_i32_276 dim 1 : vector<16x128xf32>, i32 -> vector<16x128xf32>
    %c3_277 = arith.constant 3 : index
    %c7_278 = arith.constant 7 : index
    %c0_279 = arith.constant 0 : index
    %412 = vector.load %arg3[%c3_277, %c7_278, %c0_279] : memref<4x8x128xf32, #tpu.memory_space<vmem>>, vector<1x1x128xf32>
    %413 = vector.shape_cast %412 : vector<1x1x128xf32> to vector<1x128xf32>
    %414 = vector.broadcast %413 : vector<1x128xf32> to vector<16x128xf32>
    %415 = arith.mulf %411, %414 : vector<16x128xf32>
    %416 = arith.addf %410, %415 : vector<16x128xf32>
    %c0_280 = arith.constant 0 : index
    %c0_281 = arith.constant 0 : index
    %c0_282 = arith.constant 0 : index
    %417 = vector.load %arg4[%c0_280, %c0_281, %c0_282] : memref<1x16x128xf32, #tpu.memory_space<vmem>>, vector<1x16x128xf32>
    %418 = vector.shape_cast %417 : vector<1x16x128xf32> to vector<16x128xf32>
    %419 = vector.shape_cast %416 : vector<16x128xf32> to vector<1x16x128xf32>
    tpu.vector_store %arg4[%c0_280, %c0_281, %c0_282], %419 {strides = array<i32>} : memref<1x16x128xf32, #tpu.memory_space<vmem>>, vector<1x16x128xf32>,
    return
  }
  func.func @transform_0(%arg0: i32) -> (i32, i32, i32) {
    %c0_i32 = arith.constant 0 : i32
    %c0_i32_0 = arith.constant 0 : i32
    %c0_i32_1 = arith.constant 0 : i32
    return %arg0, %c0_i32, %c0_i32_0 : i32, i32, i32
  }
  func.func @transform_1(%arg0: i32) -> (i32, i32, i32) {
    %c0_i32 = arith.constant 0 : i32
    %c0_i32_0 = arith.constant 0 : i32
    %c0_i32_1 = arith.constant 0 : i32
    %c0_i32_2 = arith.constant 0 : i32
    return %c0_i32, %c0_i32_0, %c0_i32_1 : i32, i32, i32
  }
  func.func @transform_2(%arg0: i32) -> (i32, i32, i32) {
    %c0_i32 = arith.constant 0 : i32
    %c0_i32_0 = arith.constant 0 : i32
    %c0_i32_1 = arith.constant 0 : i32
    %c0_i32_2 = arith.constant 0 : i32
    return %c0_i32, %c0_i32_0, %c0_i32_1 : i32, i32, i32
  }
  func.func @transform_3(%arg0: i32) -> (i32, i32, i32) {
    %c0_i32 = arith.constant 0 : i32
    %c0_i32_0 = arith.constant 0 : i32
    %c0_i32_1 = arith.constant 0 : i32
    return %arg0, %c0_i32, %c0_i32_0 : i32, i32, i32
  }
}

</mosaic_0001>

<llo_original>
// kernel: tpu_custom_call.1
$region0: #{tpu_custom_call.1}
  #allocation0 [shape = 'u32[]', space=smem, size = 0x4, offset = 0x4, fixed_abs, tag = 'smem constant byte address 0x4 - core index']
  #allocation1 [shape = 'u32[144,128]{1,0:T(1,128)}', space=vmem, size = 0x12000, scoped, tag = 'internal scratch']
  #allocation2 [shape = 'f32[18,128]{1,0:T(8,128)}', space=vmem, size = 0x3000, scoped, tag = 'scratch operand']
  %s0 = inlined_call_operand.vmem [shape: f32[2,18,128], index: 0, kind: input, shape index: {}]
  %s1 = inlined_call_operand.vmem [shape: f32[4,9,128], index: 1, kind: input, shape index: {}]
  %s2 = inlined_call_operand.vmem [shape: f32[4,8,128], index: 2, kind: input, shape index: {}]
  %s3 = inlined_call_operand.hbm [shape: f32[2,16,128], index: 3, kind: output, shape index: {}]
  %s4 = sld [smem:[#allocation0]]
  $region45: #{tpu_custom_call.1} parent=0
    _
  %s6 = ssub.s32 1, %s4
  %s7 = scalar_select 0, %s6, %s4
  $region1: #{tpu_custom_call.1} parent=0
    #allocation3 [shape = 'u8[16384]{0}', space=vmem, size = 0x4000, scoped, tag = 'output window, operand 0']
    #allocation4 [shape = 's32[2]{0}', space=sflag, size = 0x8, scoped, tag = 'scoped memory for tpu_custom_call.1']
    %8 = vsyncpa [#allocation4], 0
    %s9 = scalar_lea.sflag [#allocation4], 1
    %10 = vsyncpa %s9, 0
    loop: start=0, step=1, limit=4
    $region2: #{tpu_custom_call.1} parent=1 // loop_pre_header
      _
    $region3: #{tpu_custom_call.1} parent=1 // loop_header
      %s12 = sphi 0, %s16
      %p13 = scmp.ge.s32.totalorder %s12, 4
      %s22 = sphi 0, %s24
      %s25 = sphi 0, %s22
      %s26 = sphi 0, %s25
      %s42 = sphi 0, %s26
      %s46 = sphi 0, %s46
      %s48 = sphi 0, %s46
      %s49 = sphi 0, %s48
      %s63 = sphi 0, %s49
      %s67 = sphi 0, %s67
      %s69 = sphi 0, %s67
      %s70 = sphi 0, %s69
      %s84 = sphi 0, %s70
      %s90 = sphi 0, %s92
      %s93 = sphi 0, %s90
      %s94 = sphi 0, %s93
      %s110 = sphi 0, %s94
    $region4: #{tpu_custom_call.1} parent=1 // loop_header_branch
      %15 = sbr.rel (%p13) target = $region8
    $region5: #{tpu_custom_call.1} parent=1 // loop_body
      %s17 = ssub.s32 %s12, 1
      %s18 = ssub.s32 %s12, 2
      %s19 = sadd.s32 %s12, 1
      %s20 = ssub.s32 %s12, %s19
      %p21 = scmp.eq.s32.totalorder %s20, 0
      %s23 = sadd.s32 %s22, 1
      %s24 = scalar_select %p21, %s22, %s23
      %p27 = pneg %p21
      %p28 = scmp.eq.s32.totalorder %s12, 1
      %p29 = por %p27, %p28
      %p30 = scmp.ne.s32.totalorder %s22, %s25
      %p31 = scmp.eq.s32.totalorder %s12, 0
      %p32 = por %p30, %p31
      %p33 = scmp.ne.s32.totalorder %s22, %s25
      %p34 = scmp.eq.s32.totalorder %s17, 1
      %p35 = por %p33, %p34
      %p36 = scmp.ne.s32.totalorder %s25, %s26
      %p37 = scmp.eq.s32.totalorder %s17, 0
      %p38 = por %p36, %p37
      %p39 = scmp.ne.s32.totalorder %s25, %s26
      %p40 = scmp.eq.s32.totalorder %s18, 1
      %p41 = por %p39, %p40
      %p43 = scmp.ne.s32.totalorder %s26, %s42
      %p44 = scmp.eq.s32.totalorder %s18, 0
      %p45 = por %p43, %p44
      %s47 = sadd.s32 %s46, 1
      %p50 = scmp.eq.s32.totalorder %s12, 1
      %p51 = scmp.ne.s32.totalorder %s46, %s48
      %p52 = scmp.eq.s32.totalorder %s12, 0
      %p53 = por %p51, %p52
      %p54 = scmp.ne.s32.totalorder %s46, %s48
      %p55 = scmp.eq.s32.totalorder %s17, 1
      %p56 = por %p54, %p55
      %p57 = scmp.ne.s32.totalorder %s48, %s49
      %p58 = scmp.eq.s32.totalorder %s17, 0
      %p59 = por %p57, %p58
      %p60 = scmp.ne.s32.totalorder %s48, %s49
      %p61 = scmp.eq.s32.totalorder %s18, 1
      %p62 = por %p60, %p61
      %p64 = scmp.ne.s32.totalorder %s49, %s63
      %p65 = scmp.eq.s32.totalorder %s18, 0
      %p66 = por %p64, %p65
      %s68 = sadd.s32 %s67, 1
      %p71 = scmp.eq.s32.totalorder %s12, 1
      %p72 = scmp.ne.s32.totalorder %s67, %s69
      %p73 = scmp.eq.s32.totalorder %s12, 0
      %p74 = por %p72, %p73
      %p75 = scmp.ne.s32.totalorder %s67, %s69
      %p76 = scmp.eq.s32.totalorder %s17, 1
      %p77 = por %p75, %p76
      %p78 = scmp.ne.s32.totalorder %s69, %s70
      %p79 = scmp.eq.s32.totalorder %s17, 0
      %p80 = por %p78, %p79
      %p81 = scmp.ne.s32.totalorder %s69, %s70
      %p82 = scmp.eq.s32.totalorder %s18, 1
      %p83 = por %p81, %p82
      %p85 = scmp.ne.s32.totalorder %s70, %s84
      %p86 = scmp.eq.s32.totalorder %s18, 0
      %p87 = por %p85, %p86
      %s88 = ssub.s32 %s12, %s19
      %p89 = scmp.eq.s32.totalorder %s88, 0
      %s91 = sadd.s32 %s90, 1
      %s92 = scalar_select %p89, %s90, %s91
      %p95 = pneg %p89
      %p96 = scmp.eq.s32.totalorder %s12, 1
      %p97 = por %p95, %p96
      %p98 = scmp.ne.s32.totalorder %s90, %s93
      %p99 = scmp.eq.s32.totalorder %s12, 0
      %p100 = por %p98, %p99
      %p101 = scmp.ne.s32.totalorder %s90, %s93
      %p102 = scmp.eq.s32.totalorder %s17, 1
      %p103 = por %p101, %p102
      %p104 = scmp.ne.s32.totalorder %s93, %s94
      %p105 = scmp.eq.s32.totalorder %s17, 0
      %p106 = por %p104, %p105
      %p107 = scmp.ne.s32.totalorder %s93, %s94
      %p108 = scmp.eq.s32.totalorder %s18, 1
      %p109 = por %p107, %p108
      %p111 = scmp.ne.s32.totalorder %s94, %s110
      %p112 = scmp.eq.s32.totalorder %s18, 0
      %p113 = por %p111, %p112
      %p114 = scmp.le.s32.totalorder 1, %s12
      %p115 = scmp.lt.s32.totalorder %s12, 3
      %p116 = pnand %p114, %p115
      %p117 = pneg %p116
      // Predicated region
      $region9: #{tpu_custom_call.1} parent=5 // pred_check
        _
      $region10: #{tpu_custom_call.1} parent=5 // pred_check_branch
        %119 = sbr.rel (%p116) target = $region12
      $region11: #{tpu_custom_call.1} parent=5 // pred_region
        %s120 = ssub.s32 %s12, 1
        // Predicated region
        $region13: #{tpu_custom_call.1} parent=11 // pred_check
          %p121 = pneg %p59
        $region14: #{tpu_custom_call.1} parent=11 // pred_check_branch
          %123 = sbr.rel (%p121) target = $region16
        $region15: #{tpu_custom_call.1} parent=11 // pred_region
          _
        $region16: #{tpu_custom_call.1} parent=11 // pred_fallthru
          _
        // Predicated region
        $region17: #{tpu_custom_call.1} parent=11 // pred_check
          %p124 = pneg %p80
        $region18: #{tpu_custom_call.1} parent=11 // pred_check_branch
          %126 = sbr.rel (%p124) target = $region20
        $region19: #{tpu_custom_call.1} parent=11 // pred_region
          _
        $region20: #{tpu_custom_call.1} parent=11 // pred_fallthru
          _
      $region12: #{tpu_custom_call.1} parent=5 // pred_fallthru
        _
      %p127 = scmp.lt.s32.totalorder %s12, 2
      // Predicated region
      $region21: #{tpu_custom_call.1} parent=5 // pred_check
        %p128 = pneg %p127
      $region22: #{tpu_custom_call.1} parent=5 // pred_check_branch
        %130 = sbr.rel (%p128) target = $region24
      $region23: #{tpu_custom_call.1} parent=5 // pred_region
        // Predicated region
        $region25: #{tpu_custom_call.1} parent=23 // pred_check
          %p131 = pneg %p32
        $region26: #{tpu_custom_call.1} parent=23 // pred_check_branch
          %133 = sbr.rel (%p131) target = $region28
        $region27: #{tpu_custom_call.1} parent=23 // pred_region
          %p134 = scmp.lt.s32.totalorder %s12, 1
          %s135 = scalar_select %p134, %s12, 1
          %s136 = smul.addr %s135, 3
          %s137 = smul.addr %s136, 8
          %s138 = scalar_lea.vmem %s0, %s137
        $region28: #{tpu_custom_call.1} parent=23 // pred_fallthru
          _
      $region24: #{tpu_custom_call.1} parent=5 // pred_fallthru
        _
      %p139 = scmp.le.s32.totalorder 1, %s12
      %p140 = scmp.lt.s32.totalorder %s12, 3
      %p141 = pnand %p139, %p140
      %p142 = pneg %p141
      // Predicated region
      $region29: #{tpu_custom_call.1} parent=5 // pred_check
        _
      $region30: #{tpu_custom_call.1} parent=5 // pred_check_branch
        %144 = sbr.rel (%p141) target = $region32
      $region31: #{tpu_custom_call.1} parent=5 // pred_region
        %s145 = ssub.s32 %s12, 1
        %p146 = scmp.lt.s32.totalorder %s17, 1
        %s147 = scalar_select %p146, %s17, 1
        %s148 = smul.addr %s147, 3
        %s149 = smul.addr %s148, 8
        %s150 = scalar_lea.vmem %s0, %s149
        %p151 = pneg %p38
        %p152 = pneg %p35
        %p153 = pneg %p59
        %p154 = pneg %p56
        %p155 = pneg %p80
        %p156 = pneg %p77
        %p157 = pneg %p106
        %p158 = pneg %p103
        %s159 = sand.u32 %s93, 1
        %s160 = scalar_lea.sflag [#allocation4], %s159
        %s161 = sand.u32 %s93, 1
        %s162 = smul.addr %s161, 16
        %s163 = scalar_lea.vmem [#allocation3], %s162
        %p164 = scmp.lt.s32.totalorder %s17, 1
        %s165 = scalar_select %p164, %s17, 1
        %s166 = smul.addr %s165, 3
        %s167 = smul.addr %s166, 8
        %s168 = scalar_lea.vmem %s0, %s167
        %169 = vst [vmem:[#allocation2] sm:$0x1] 0.0
        %170 = vst [vmem:[#allocation2 + $0x11] sm:$0x1] 0.0
        %v171 = vld [vmem:[%s168] sm:$0xff]
        %v172 = vld [vmem:[%s168 + $0x8] sm:$0xff]
        %173 = vrot.lane.b32.xlu0 %v171, 1
        %v174 = vpop.permute.xlu0 %173
        %175 = vrot.lane.b32.xlu0 %v172, 1
        %v176 = vpop.permute.xlu0 %175
        %v177 = vld [vmem:[%s1] sm:$0x1]
        %v178 = vlaneseq
        %v179 = vshrl.u32 %v178, 7
        %v180 = vsub.s32 0, %v179
        %v181 = vrot.slane %v177, %v180
        %v182 = vmul.f32 %v174, %v181
        %v183 = vmul.f32 %v176, %v181
        %v184 = vld [vmem:[%s1 + $0x1] sm:$0x1]
        %v185 = vlaneseq
        %v186 = vshrl.u32 %v185, 7
        %v187 = vsub.s32 0, %v186
        %v188 = vrot.slane %v184, %v187
        %v189 = vmul.f32 %v171, %v188
        %v190 = vmul.f32 %v172, %v188
        %v191 = vadd.f32 %v182, %v189
        %v192 = vadd.f32 %v183, %v190
        %193 = vrot.lane.b32.xlu0 %v171, 127
        %v194 = vpop.permute.xlu0 %193
        %195 = vrot.lane.b32.xlu0 %v172, 127
        %v196 = vpop.permute.xlu0 %195
        %v197 = vld [vmem:[%s1 + $0x2] sm:$0x1]
        %v198 = vlaneseq
        %v199 = vshrl.u32 %v198, 7
        %v200 = vsub.s32 0, %v199
        %v201 = vrot.slane %v197, %v200
        %v202 = vmul.f32 %v194, %v201
        %v203 = vmul.f32 %v196, %v201
        %v204 = vadd.f32 %v191, %v202
        %v205 = vadd.f32 %v192, %v203
        %v206 = vld [vmem:[%s168 + $0x1] sm:$0xff]
        %v207 = vld [vmem:[%s168 + $0x9] sm:$0xff]
        %208 = vrot.lane.b32.xlu0 %v206, 1
        %v209 = vpop.permute.xlu0 %208
        %210 = vrot.lane.b32.xlu0 %v207, 1
        %v211 = vpop.permute.xlu0 %210
        %v212 = vld [vmem:[%s1 + $0x3] sm:$0x1]
        %v213 = vlaneseq
        %v214 = vshrl.u32 %v213, 7
        %v215 = vsub.s32 0, %v214
        %v216 = vrot.slane %v212, %v215
        %v217 = vmul.f32 %v209, %v216
        %v218 = vmul.f32 %v211, %v216
        %v219 = vadd.f32 %v204, %v217
        %v220 = vadd.f32 %v205, %v218
        %v221 = vld [vmem:[%s1 + $0x4] sm:$0x1]
        %v222 = vlaneseq
        %v223 = vshrl.u32 %v222, 7
        %v224 = vsub.s32 0, %v223
        %v225 = vrot.slane %v221, %v224
        %v226 = vmul.f32 %v206, %v225
        %v227 = vmul.f32 %v207, %v225
        %v228 = vadd.f32 %v219, %v226
        %v229 = vadd.f32 %v220, %v227
        %230 = vrot.lane.b32.xlu0 %v206, 127
        %v231 = vpop.permute.xlu0 %230
        %232 = vrot.lane.b32.xlu0 %v207, 127
        %v233 = vpop.permute.xlu0 %232
        %v234 = vld [vmem:[%s1 + $0x5] sm:$0x1]
        %v235 = vlaneseq
        %v236 = vshrl.u32 %v235, 7
        %v237 = vsub.s32 0, %v236
        %v238 = vrot.slane %v234, %v237
        %v239 = vmul.f32 %v231, %v238
        %v240 = vmul.f32 %v233, %v238
        %v241 = vadd.f32 %v228, %v239
        %v242 = vadd.f32 %v229, %v240
        %v243 = vld [vmem:[%s168 + $0x2] sm:$0xff]
        %v244 = vld [vmem:[%s168 + $0xa] sm:$0xff]
        %245 = vrot.lane.b32.xlu0 %v243, 1
        %v246 = vpop.permute.xlu0 %245
        %247 = vrot.lane.b32.xlu0 %v244, 1
        %v248 = vpop.permute.xlu0 %247
        %v249 = vld [vmem:[%s1 + $0x6] sm:$0x1]
        %v250 = vlaneseq
        %v251 = vshrl.u32 %v250, 7
        %v252 = vsub.s32 0, %v251
        %v253 = vrot.slane %v249, %v252
        %v254 = vmul.f32 %v246, %v253
        %v255 = vmul.f32 %v248, %v253
        %v256 = vadd.f32 %v241, %v254
        %v257 = vadd.f32 %v242, %v255
        %v258 = vld [vmem:[%s1 + $0x7] sm:$0x1]
        %v259 = vlaneseq
        %v260 = vshrl.u32 %v259, 7
        %v261 = vsub.s32 0, %v260
        %v262 = vrot.slane %v258, %v261
        %v263 = vmul.f32 %v243, %v262
        %v264 = vmul.f32 %v244, %v262
        %v265 = vadd.f32 %v256, %v263
        %v266 = vadd.f32 %v257, %v264
        %267 = vrot.lane.b32.xlu0 %v243, 127
        %v268 = vpop.permute.xlu0 %267
        %269 = vrot.lane.b32.xlu0 %v244, 127
        %v270 = vpop.permute.xlu0 %269
        %v271 = vld [vmem:[%s1 + $0x8] sm:$0x1]
        %v272 = vlaneseq
        %v273 = vshrl.u32 %v272, 7
        %v274 = vsub.s32 0, %v273
        %v275 = vrot.slane %v271, %v274
        %v276 = vmul.f32 %v268, %v275
        %v277 = vmul.f32 %v270, %v275
        %v278 = vadd.f32 %v265, %v276
        %v279 = vadd.f32 %v266, %v277
        %v280 = vld [vmem:[%s2] sm:$0x1]
        %v281 = vlaneseq
        %v282 = vshrl.u32 %v281, 7
        %v283 = vsub.s32 0, %v282
        %v284 = vrot.slane %v280, %v283
        %v285 = vmul.f32 %v278, %v284
        %v286 = vmul.f32 %v279, %v284
        %287 = vrot.lane.b32.xlu0 %v278, 16
        %v288 = vpop.permute.xlu0 %287
        %289 = vrot.lane.b32.xlu0 %v279, 16
        %v290 = vpop.permute.xlu0 %289
        %v291 = vld [vmem:[%s2 + $0x1] sm:$0x1]
        %v292 = vlaneseq
        %v293 = vshrl.u32 %v292, 7
        %v294 = vsub.s32 0, %v293
        %v295 = vrot.slane %v291, %v294
        %v296 = vmul.f32 %v288, %v295
        %v297 = vmul.f32 %v290, %v295
        %v298 = vadd.f32 %v285, %v296
        %v299 = vadd.f32 %v286, %v297
        %300 = vrot.lane.b32.xlu0 %v278, 32
        %v301 = vpop.permute.xlu0 %300
        %302 = vrot.lane.b32.xlu0 %v279, 32
        %v303 = vpop.permute.xlu0 %302
        %v304 = vld [vmem:[%s2 + $0x2] sm:$0x1]
        %v305 = vlaneseq
        %v306 = vshrl.u32 %v305, 7
        %v307 = vsub.s32 0, %v306
        %v308 = vrot.slane %v304, %v307
        %v309 = vmul.f32 %v301, %v308
        %v310 = vmul.f32 %v303, %v308
        %v311 = vadd.f32 %v298, %v309
        %v312 = vadd.f32 %v299, %v310
        %313 = vrot.lane.b32.xlu0 %v278, 48
        %v314 = vpop.permute.xlu0 %313
        %315 = vrot.lane.b32.xlu0 %v279, 48
        %v316 = vpop.permute.xlu0 %315
        %v317 = vld [vmem:[%s2 + $0x3] sm:$0x1]
        %v318 = vlaneseq
        %v319 = vshrl.u32 %v318, 7
        %v320 = vsub.s32 0, %v319
        %v321 = vrot.slane %v317, %v320
        %v322 = vmul.f32 %v314, %v321
        %v323 = vmul.f32 %v316, %v321
        %v324 = vadd.f32 %v311, %v322
        %v325 = vadd.f32 %v312, %v323
        %326 = vrot.lane.b32.xlu0 %v278, 64
        %v327 = vpop.permute.xlu0 %326
        %328 = vrot.lane.b32.xlu0 %v279, 64
        %v329 = vpop.permute.xlu0 %328
        %v330 = vld [vmem:[%s2 + $0x4] sm:$0x1]
        %v331 = vlaneseq
        %v332 = vshrl.u32 %v331, 7
        %v333 = vsub.s32 0, %v332
        %v334 = vrot.slane %v330, %v333
        %v335 = vmul.f32 %v327, %v334
        %v336 = vmul.f32 %v329, %v334
        %v337 = vadd.f32 %v324, %v335
        %v338 = vadd.f32 %v325, %v336
        %339 = vrot.lane.b32.xlu0 %v278, 80
        %v340 = vpop.permute.xlu0 %339
        %341 = vrot.lane.b32.xlu0 %v279, 80
        %v342 = vpop.permute.xlu0 %341
        %v343 = vld [vmem:[%s2 + $0x5] sm:$0x1]
        %v344 = vlaneseq
        %v345 = vshrl.u32 %v344, 7
        %v346 = vsub.s32 0, %v345
        %v347 = vrot.slane %v343, %v346
        %v348 = vmul.f32 %v340, %v347
        %v349 = vmul.f32 %v342, %v347
        %v350 = vadd.f32 %v337, %v348
        %v351 = vadd.f32 %v338, %v349
        %352 = vrot.lane.b32.xlu0 %v278, 96
        %v353 = vpop.permute.xlu0 %352
        %354 = vrot.lane.b32.xlu0 %v279, 96
        %v355 = vpop.permute.xlu0 %354
        %v356 = vld [vmem:[%s2 + $0x6] sm:$0x1]
        %v357 = vlaneseq
        %v358 = vshrl.u32 %v357, 7
        %v359 = vsub.s32 0, %v358
        %v360 = vrot.slane %v356, %v359
        %v361 = vmul.f32 %v353, %v360
        %v362 = vmul.f32 %v355, %v360
        %v363 = vadd.f32 %v350, %v361
        %v364 = vadd.f32 %v351, %v362
        %365 = vrot.lane.b32.xlu0 %v278, 112
        %v366 = vpop.permute.xlu0 %365
        %367 = vrot.lane.b32.xlu0 %v279, 112
        %v368 = vpop.permute.xlu0 %367
        %v369 = vld [vmem:[%s2 + $0x7] sm:$0x1]
        %v370 = vlaneseq
        %v371 = vshrl.u32 %v370, 7
        %v372 = vsub.s32 0, %v371
        %v373 = vrot.slane %v369, %v372
        %v374 = vmul.f32 %v366, %v373
        %v375 = vmul.f32 %v368, %v373
        %v376 = vadd.f32 %v363, %v374
        %v377 = vadd.f32 %v364, %v375
        %v378 = vmax.f32 %v376, 0.0
        %v379 = vmax.f32 %v377, 0.0
        %v380 = vmin.f32 %v378, 6.0
        %v381 = vmin.f32 %v379, 6.0
        %382 = vst [vmem:[#allocation2 + $0x1] sm:$0xff] %v380
        %383 = vst [vmem:[#allocation2 + $0x9] sm:$0xff] %v381
        %v384 = vld [vmem:[#allocation2] sm:$0xff]
        %v385 = vld [vmem:[#allocation2 + $0x8] sm:$0xff]
        %386 = vrot.lane.b32.xlu0 %v384, 1
        %v387 = vpop.permute.xlu0 %386
        %388 = vrot.lane.b32.xlu0 %v385, 1
        %v389 = vpop.permute.xlu0 %388
        %s390 = scalar_lea.vmem %s1, 16
        %v391 = vld [vmem:[%s390] sm:$0x1]
        %v392 = vlaneseq
        %v393 = vshrl.u32 %v392, 7
        %v394 = vsub.s32 0, %v393
        %v395 = vrot.slane %v391, %v394
        %v396 = vmul.f32 %v387, %v395
        %v397 = vmul.f32 %v389, %v395
        %v398 = vld [vmem:[%s390 + $0x1] sm:$0x1]
        %v399 = vlaneseq
        %v400 = vshrl.u32 %v399, 7
        %v401 = vsub.s32 0, %v400
        %v402 = vrot.slane %v398, %v401
        %v403 = vmul.f32 %v384, %v402
        %v404 = vmul.f32 %v385, %v402
        %v405 = vadd.f32 %v396, %v403
        %v406 = vadd.f32 %v397, %v404
        %407 = vrot.lane.b32.xlu0 %v384, 127
        %v408 = vpop.permute.xlu0 %407
        %409 = vrot.lane.b32.xlu0 %v385, 127
        %v410 = vpop.permute.xlu0 %409
        %v411 = vld [vmem:[%s390 + $0x2] sm:$0x1]
        %v412 = vlaneseq
        %v413 = vshrl.u32 %v412, 7
        %v414 = vsub.s32 0, %v413
        %v415 = vrot.slane %v411, %v414
        %v416 = vmul.f32 %v408, %v415
        %v417 = vmul.f32 %v410, %v415
        %v418 = vadd.f32 %v405, %v416
        %v419 = vadd.f32 %v406, %v417
        %v420 = vld [vmem:[#allocation2 + $0x1] sm:$0xff]
        %v421 = vld [vmem:[#allocation2 + $0x9] sm:$0xff]
        %422 = vrot.lane.b32.xlu0 %v420, 1
        %v423 = vpop.permute.xlu0 %422
        %424 = vrot.lane.b32.xlu0 %v421, 1
        %v425 = vpop.permute.xlu0 %424
        %v426 = vld [vmem:[%s390 + $0x3] sm:$0x1]
        %v427 = vlaneseq
        %v428 = vshrl.u32 %v427, 7
        %v429 = vsub.s32 0, %v428
        %v430 = vrot.slane %v426, %v429
        %v431 = vmul.f32 %v423, %v430
        %v432 = vmul.f32 %v425, %v430
        %v433 = vadd.f32 %v418, %v431
        %v434 = vadd.f32 %v419, %v432
        %v435 = vld [vmem:[%s390 + $0x4] sm:$0x1]
        %v436 = vlaneseq
        %v437 = vshrl.u32 %v436, 7
        %v438 = vsub.s32 0, %v437
        %v439 = vrot.slane %v435, %v438
        %v440 = vmul.f32 %v420, %v439
        %v441 = vmul.f32 %v421, %v439
        %v442 = vadd.f32 %v433, %v440
        %v443 = vadd.f32 %v434, %v441
        %444 = vrot.lane.b32.xlu0 %v420, 127
        %v445 = vpop.permute.xlu0 %444
        %446 = vrot.lane.b32.xlu0 %v421, 127
        %v447 = vpop.permute.xlu0 %446
        %v448 = vld [vmem:[%s390 + $0x5] sm:$0x1]
        %v449 = vlaneseq
        %v450 = vshrl.u32 %v449, 7
        %v451 = vsub.s32 0, %v450
        %v452 = vrot.slane %v448, %v451
        %v453 = vmul.f32 %v445, %v452
        %v454 = vmul.f32 %v447, %v452
        %v455 = vadd.f32 %v442, %v453
        %v456 = vadd.f32 %v443, %v454
        %v457 = vld [vmem:[#allocation2 + $0x2] sm:$0xff]
        %v458 = vld [vmem:[#allocation2 + $0xa] sm:$0xff]
        %459 = vrot.lane.b32.xlu0 %v457, 1
        %v460 = vpop.permute.xlu0 %459
        %461 = vrot.lane.b32.xlu0 %v458, 1
        %v462 = vpop.permute.xlu0 %461
        %v463 = vld [vmem:[%s390 + $0x6] sm:$0x1]
        %v464 = vlaneseq
        %v465 = vshrl.u32 %v464, 7
        %v466 = vsub.s32 0, %v465
        %v467 = vrot.slane %v463, %v466
        %v468 = vmul.f32 %v460, %v467
        %v469 = vmul.f32 %v462, %v467
        %v470 = vadd.f32 %v455, %v468
        %v471 = vadd.f32 %v456, %v469
        %v472 = vld [vmem:[%s390 + $0x7] sm:$0x1]
        %v473 = vlaneseq
        %v474 = vshrl.u32 %v473, 7
        %v475 = vsub.s32 0, %v474
        %v476 = vrot.slane %v472, %v475
        %v477 = vmul.f32 %v457, %v476
        %v478 = vmul.f32 %v458, %v476
        %v479 = vadd.f32 %v470, %v477
        %v480 = vadd.f32 %v471, %v478
        %481 = vrot.lane.b32.xlu0 %v457, 127
        %v482 = vpop.permute.xlu0 %481
        %483 = vrot.lane.b32.xlu0 %v458, 127
        %v484 = vpop.permute.xlu0 %483
        %v485 = vld [vmem:[%s390 + $0x8] sm:$0x1]
        %v486 = vlaneseq
        %v487 = vshrl.u32 %v486, 7
        %v488 = vsub.s32 0, %v487
        %v489 = vrot.slane %v485, %v488
        %v490 = vmul.f32 %v482, %v489
        %v491 = vmul.f32 %v484, %v489
        %v492 = vadd.f32 %v479, %v490
        %v493 = vadd.f32 %v480, %v491
        %s494 = scalar_lea.vmem %s2, 8
        %v495 = vld [vmem:[%s494] sm:$0x1]
        %v496 = vlaneseq
        %v497 = vshrl.u32 %v496, 7
        %v498 = vsub.s32 0, %v497
        %v499 = vrot.slane %v495, %v498
        %v500 = vmul.f32 %v492, %v499
        %v501 = vmul.f32 %v493, %v499
        %502 = vrot.lane.b32.xlu0 %v492, 16
        %v503 = vpop.permute.xlu0 %502
        %504 = vrot.lane.b32.xlu0 %v493, 16
        %v505 = vpop.permute.xlu0 %504
        %v506 = vld [vmem:[%s494 + $0x1] sm:$0x1]
        %v507 = vlaneseq
        %v508 = vshrl.u32 %v507, 7
        %v509 = vsub.s32 0, %v508
        %v510 = vrot.slane %v506, %v509
        %v511 = vmul.f32 %v503, %v510
        %v512 = vmul.f32 %v505, %v510
        %v513 = vadd.f32 %v500, %v511
        %v514 = vadd.f32 %v501, %v512
        %515 = vrot.lane.b32.xlu0 %v492, 32
        %v516 = vpop.permute.xlu0 %515
        %517 = vrot.lane.b32.xlu0 %v493, 32
        %v518 = vpop.permute.xlu0 %517
        %v519 = vld [vmem:[%s494 + $0x2] sm:$0x1]
        %v520 = vlaneseq
        %v521 = vshrl.u32 %v520, 7
        %v522 = vsub.s32 0, %v521
        %v523 = vrot.slane %v519, %v522
        %v524 = vmul.f32 %v516, %v523
        %v525 = vmul.f32 %v518, %v523
        %v526 = vadd.f32 %v513, %v524
        %v527 = vadd.f32 %v514, %v525
        %528 = vrot.lane.b32.xlu0 %v492, 48
        %v529 = vpop.permute.xlu0 %528
        %530 = vrot.lane.b32.xlu0 %v493, 48
        %v531 = vpop.permute.xlu0 %530
        %v532 = vld [vmem:[%s494 + $0x3] sm:$0x1]
        %v533 = vlaneseq
        %v534 = vshrl.u32 %v533, 7
        %v535 = vsub.s32 0, %v534
        %v536 = vrot.slane %v532, %v535
        %v537 = vmul.f32 %v529, %v536
        %v538 = vmul.f32 %v531, %v536
        %v539 = vadd.f32 %v526, %v537
        %v540 = vadd.f32 %v527, %v538
        %541 = vrot.lane.b32.xlu0 %v492, 64
        %v542 = vpop.permute.xlu0 %541
        %543 = vrot.lane.b32.xlu0 %v493, 64
        %v544 = vpop.permute.xlu0 %543
        %v545 = vld [vmem:[%s494 + $0x4] sm:$0x1]
        %v546 = vlaneseq
        %v547 = vshrl.u32 %v546, 7
        %v548 = vsub.s32 0, %v547
        %v549 = vrot.slane %v545, %v548
        %v550 = vmul.f32 %v542, %v549
        %v551 = vmul.f32 %v544, %v549
        %v552 = vadd.f32 %v539, %v550
        %v553 = vadd.f32 %v540, %v551
        %554 = vrot.lane.b32.xlu0 %v492, 80
        %v555 = vpop.permute.xlu0 %554
        %556 = vrot.lane.b32.xlu0 %v493, 80
        %v557 = vpop.permute.xlu0 %556
        %v558 = vld [vmem:[%s494 + $0x5] sm:$0x1]
        %v559 = vlaneseq
        %v560 = vshrl.u32 %v559, 7
        %v561 = vsub.s32 0, %v560
        %v562 = vrot.slane %v558, %v561
        %v563 = vmul.f32 %v555, %v562
        %v564 = vmul.f32 %v557, %v562
        %v565 = vadd.f32 %v552, %v563
        %v566 = vadd.f32 %v553, %v564
        %567 = vrot.lane.b32.xlu0 %v492, 96
        %v568 = vpop.permute.xlu0 %567
        %569 = vrot.lane.b32.xlu0 %v493, 96
        %v570 = vpop.permute.xlu0 %569
        %v571 = vld [vmem:[%s494 + $0x6] sm:$0x1]
        %v572 = vlaneseq
        %v573 = vshrl.u32 %v572, 7
        %v574 = vsub.s32 0, %v573
        %v575 = vrot.slane %v571, %v574
        %v576 = vmul.f32 %v568, %v575
        %v577 = vmul.f32 %v570, %v575
        %v578 = vadd.f32 %v565, %v576
        %v579 = vadd.f32 %v566, %v577
        %580 = vrot.lane.b32.xlu0 %v492, 112
        %v581 = vpop.permute.xlu0 %580
        %582 = vrot.lane.b32.xlu0 %v493, 112
        %v583 = vpop.permute.xlu0 %582
        %v584 = vld [vmem:[%s494 + $0x7] sm:$0x1]
        %v585 = vlaneseq
        %v586 = vshrl.u32 %v585, 7
        %v587 = vsub.s32 0, %v586
        %v588 = vrot.slane %v584, %v587
        %v589 = vmul.f32 %v581, %v588
        %v590 = vmul.f32 %v583, %v588
        %v591 = vadd.f32 %v578, %v589
        %v592 = vadd.f32 %v579, %v590
        %v593 = vmax.f32 %v591, 0.0
        %v594 = vmax.f32 %v592, 0.0
        %v595 = vmin.f32 %v593, 6.0
        %v596 = vmin.f32 %v594, 6.0
        %597 = vst [vmem:[#allocation2 + $0x1] sm:$0xff] %v595
        %598 = vst [vmem:[#allocation2 + $0x9] sm:$0xff] %v596
        %v599 = vld [vmem:[#allocation2] sm:$0xff]
        %v600 = vld [vmem:[#allocation2 + $0x8] sm:$0xff]
        %601 = vrot.lane.b32.xlu0 %v599, 1
        %v602 = vpop.permute.xlu0 %601
        %603 = vrot.lane.b32.xlu0 %v600, 1
        %v604 = vpop.permute.xlu0 %603
        %s605 = scalar_lea.vmem %s1, 32
        %v606 = vld [vmem:[%s605] sm:$0x1]
        %v607 = vlaneseq
        %v608 = vshrl.u32 %v607, 7
        %v609 = vsub.s32 0, %v608
        %v610 = vrot.slane %v606, %v609
        %v611 = vmul.f32 %v602, %v610
        %v612 = vmul.f32 %v604, %v610
        %v613 = vld [vmem:[%s605 + $0x1] sm:$0x1]
        %v614 = vlaneseq
        %v615 = vshrl.u32 %v614, 7
        %v616 = vsub.s32 0, %v615
        %v617 = vrot.slane %v613, %v616
        %v618 = vmul.f32 %v599, %v617
        %v619 = vmul.f32 %v600, %v617
        %v620 = vadd.f32 %v611, %v618
        %v621 = vadd.f32 %v612, %v619
        %622 = vrot.lane.b32.xlu0 %v599, 127
        %v623 = vpop.permute.xlu0 %622
        %624 = vrot.lane.b32.xlu0 %v600, 127
        %v625 = vpop.permute.xlu0 %624
        %v626 = vld [vmem:[%s605 + $0x2] sm:$0x1]
        %v627 = vlaneseq
        %v628 = vshrl.u32 %v627, 7
        %v629 = vsub.s32 0, %v628
        %v630 = vrot.slane %v626, %v629
        %v631 = vmul.f32 %v623, %v630
        %v632 = vmul.f32 %v625, %v630
        %v633 = vadd.f32 %v620, %v631
        %v634 = vadd.f32 %v621, %v632
        %v635 = vld [vmem:[#allocation2 + $0x1] sm:$0xff]
        %v636 = vld [vmem:[#allocation2 + $0x9] sm:$0xff]
        %637 = vrot.lane.b32.xlu0 %v635, 1
        %v638 = vpop.permute.xlu0 %637
        %639 = vrot.lane.b32.xlu0 %v636, 1
        %v640 = vpop.permute.xlu0 %639
        %v641 = vld [vmem:[%s605 + $0x3] sm:$0x1]
        %v642 = vlaneseq
        %v643 = vshrl.u32 %v642, 7
        %v644 = vsub.s32 0, %v643
        %v645 = vrot.slane %v641, %v644
        %v646 = vmul.f32 %v638, %v645
        %v647 = vmul.f32 %v640, %v645
        %v648 = vadd.f32 %v633, %v646
        %v649 = vadd.f32 %v634, %v647
        %v650 = vld [vmem:[%s605 + $0x4] sm:$0x1]
        %v651 = vlaneseq
        %v652 = vshrl.u32 %v651, 7
        %v653 = vsub.s32 0, %v652
        %v654 = vrot.slane %v650, %v653
        %v655 = vmul.f32 %v635, %v654
        %v656 = vmul.f32 %v636, %v654
        %v657 = vadd.f32 %v648, %v655
        %v658 = vadd.f32 %v649, %v656
        %659 = vrot.lane.b32.xlu0 %v635, 127
        %v660 = vpop.permute.xlu0 %659
        %661 = vrot.lane.b32.xlu0 %v636, 127
        %v662 = vpop.permute.xlu0 %661
        %v663 = vld [vmem:[%s605 + $0x5] sm:$0x1]
        %v664 = vlaneseq
        %v665 = vshrl.u32 %v664, 7
        %v666 = vsub.s32 0, %v665
        %v667 = vrot.slane %v663, %v666
        %v668 = vmul.f32 %v660, %v667
        %v669 = vmul.f32 %v662, %v667
        %v670 = vadd.f32 %v657, %v668
        %v671 = vadd.f32 %v658, %v669
        %v672 = vld [vmem:[#allocation2 + $0x2] sm:$0xff]
        %v673 = vld [vmem:[#allocation2 + $0xa] sm:$0xff]
        %674 = vrot.lane.b32.xlu0 %v672, 1
        %v675 = vpop.permute.xlu0 %674
        %676 = vrot.lane.b32.xlu0 %v673, 1
        %v677 = vpop.permute.xlu0 %676
        %v678 = vld [vmem:[%s605 + $0x6] sm:$0x1]
        %v679 = vlaneseq
        %v680 = vshrl.u32 %v679, 7
        %v681 = vsub.s32 0, %v680
        %v682 = vrot.slane %v678, %v681
        %v683 = vmul.f32 %v675, %v682
        %v684 = vmul.f32 %v677, %v682
        %v685 = vadd.f32 %v670, %v683
        %v686 = vadd.f32 %v671, %v684
        %v687 = vld [vmem:[%s605 + $0x7] sm:$0x1]
        %v688 = vlaneseq
        %v689 = vshrl.u32 %v688, 7
        %v690 = vsub.s32 0, %v689
        %v691 = vrot.slane %v687, %v690
        %v692 = vmul.f32 %v672, %v691
        %v693 = vmul.f32 %v673, %v691
        %v694 = vadd.f32 %v685, %v692
        %v695 = vadd.f32 %v686, %v693
        %696 = vrot.lane.b32.xlu0 %v672, 127
        %v697 = vpop.permute.xlu0 %696
        %698 = vrot.lane.b32.xlu0 %v673, 127
        %v699 = vpop.permute.xlu0 %698
        %v700 = vld [vmem:[%s605 + $0x8] sm:$0x1]
        %v701 = vlaneseq
        %v702 = vshrl.u32 %v701, 7
        %v703 = vsub.s32 0, %v702
        %v704 = vrot.slane %v700, %v703
        %v705 = vmul.f32 %v697, %v704
        %v706 = vmul.f32 %v699, %v704
        %v707 = vadd.f32 %v694, %v705
        %v708 = vadd.f32 %v695, %v706
        %s709 = scalar_lea.vmem %s2, 16
        %v710 = vld [vmem:[%s709] sm:$0x1]
        %v711 = vlaneseq
        %v712 = vshrl.u32 %v711, 7
        %v713 = vsub.s32 0, %v712
        %v714 = vrot.slane %v710, %v713
        %v715 = vmul.f32 %v707, %v714
        %v716 = vmul.f32 %v708, %v714
        %717 = vrot.lane.b32.xlu0 %v707, 16
        %v718 = vpop.permute.xlu0 %717
        %719 = vrot.lane.b32.xlu0 %v708, 16
        %v720 = vpop.permute.xlu0 %719
        %v721 = vld [vmem:[%s709 + $0x1] sm:$0x1]
        %v722 = vlaneseq
        %v723 = vshrl.u32 %v722, 7
        %v724 = vsub.s32 0, %v723
        %v725 = vrot.slane %v721, %v724
        %v726 = vmul.f32 %v718, %v725
        %v727 = vmul.f32 %v720, %v725
        %v728 = vadd.f32 %v715, %v726
        %v729 = vadd.f32 %v716, %v727
        %730 = vrot.lane.b32.xlu0 %v707, 32
        %v731 = vpop.permute.xlu0 %730
        %732 = vrot.lane.b32.xlu0 %v708, 32
        %v733 = vpop.permute.xlu0 %732
        %v734 = vld [vmem:[%s709 + $0x2] sm:$0x1]
        %v735 = vlaneseq
        %v736 = vshrl.u32 %v735, 7
        %v737 = vsub.s32 0, %v736
        %v738 = vrot.slane %v734, %v737
        %v739 = vmul.f32 %v731, %v738
        %v740 = vmul.f32 %v733, %v738
        %v741 = vadd.f32 %v728, %v739
        %v742 = vadd.f32 %v729, %v740
        %743 = vrot.lane.b32.xlu0 %v707, 48
        %v744 = vpop.permute.xlu0 %743
        %745 = vrot.lane.b32.xlu0 %v708, 48
        %v746 = vpop.permute.xlu0 %745
        %v747 = vld [vmem:[%s709 + $0x3] sm:$0x1]
        %v748 = vlaneseq
        %v749 = vshrl.u32 %v748, 7
        %v750 = vsub.s32 0, %v749
        %v751 = vrot.slane %v747, %v750
        %v752 = vmul.f32 %v744, %v751
        %v753 = vmul.f32 %v746, %v751
        %v754 = vadd.f32 %v741, %v752
        %v755 = vadd.f32 %v742, %v753
        %756 = vrot.lane.b32.xlu0 %v707, 64
        %v757 = vpop.permute.xlu0 %756
        %758 = vrot.lane.b32.xlu0 %v708, 64
        %v759 = vpop.permute.xlu0 %758
        %v760 = vld [vmem:[%s709 + $0x4] sm:$0x1]
        %v761 = vlaneseq
        %v762 = vshrl.u32 %v761, 7
        %v763 = vsub.s32 0, %v762
        %v764 = vrot.slane %v760, %v763
        %v765 = vmul.f32 %v757, %v764
        %v766 = vmul.f32 %v759, %v764
        %v767 = vadd.f32 %v754, %v765
        %v768 = vadd.f32 %v755, %v766
        %769 = vrot.lane.b32.xlu0 %v707, 80
        %v770 = vpop.permute.xlu0 %769
        %771 = vrot.lane.b32.xlu0 %v708, 80
        %v772 = vpop.permute.xlu0 %771
        %v773 = vld [vmem:[%s709 + $0x5] sm:$0x1]
        %v774 = vlaneseq
        %v775 = vshrl.u32 %v774, 7
        %v776 = vsub.s32 0, %v775
        %v777 = vrot.slane %v773, %v776
        %v778 = vmul.f32 %v770, %v777
        %v779 = vmul.f32 %v772, %v777
        %v780 = vadd.f32 %v767, %v778
        %v781 = vadd.f32 %v768, %v779
        %782 = vrot.lane.b32.xlu0 %v707, 96
        %v783 = vpop.permute.xlu0 %782
        %784 = vrot.lane.b32.xlu0 %v708, 96
        %v785 = vpop.permute.xlu0 %784
        %v786 = vld [vmem:[%s709 + $0x6] sm:$0x1]
        %v787 = vlaneseq
        %v788 = vshrl.u32 %v787, 7
        %v789 = vsub.s32 0, %v788
        %v790 = vrot.slane %v786, %v789
        %v791 = vmul.f32 %v783, %v790
        %v792 = vmul.f32 %v785, %v790
        %v793 = vadd.f32 %v780, %v791
        %v794 = vadd.f32 %v781, %v792
        %795 = vrot.lane.b32.xlu0 %v707, 112
        %v796 = vpop.permute.xlu0 %795
        %797 = vrot.lane.b32.xlu0 %v708, 112
        %v798 = vpop.permute.xlu0 %797
        %v799 = vld [vmem:[%s709 + $0x7] sm:$0x1]
        %v800 = vlaneseq
        %v801 = vshrl.u32 %v800, 7
        %v802 = vsub.s32 0, %v801
        %v803 = vrot.slane %v799, %v802
        %v804 = vmul.f32 %v796, %v803
        %v805 = vmul.f32 %v798, %v803
        %v806 = vadd.f32 %v793, %v804
        %v807 = vadd.f32 %v794, %v805
        %v808 = vmax.f32 %v806, 0.0
        %v809 = vmax.f32 %v807, 0.0
        %v810 = vmin.f32 %v808, 6.0
        %v811 = vmin.f32 %v809, 6.0
        %812 = vst [vmem:[#allocation2 + $0x1] sm:$0xff] %v810
        %813 = vst [vmem:[#allocation2 + $0x9] sm:$0xff] %v811
        %v814 = vld [vmem:[#allocation2] sm:$0xff]
        %v815 = vld [vmem:[#allocation2 + $0x8] sm:$0xff]
        %816 = vrot.lane.b32.xlu0 %v814, 1
        %v817 = vpop.permute.xlu0 %816
        %818 = vrot.lane.b32.xlu0 %v815, 1
        %v819 = vpop.permute.xlu0 %818
        %s820 = scalar_lea.vmem %s1, 48
        %v821 = vld [vmem:[%s820] sm:$0x1]
        %v822 = vlaneseq
        %v823 = vshrl.u32 %v822, 7
        %v824 = vsub.s32 0, %v823
        %v825 = vrot.slane %v821, %v824
        %v826 = vmul.f32 %v817, %v825
        %v827 = vmul.f32 %v819, %v825
        %v828 = vld [vmem:[%s820 + $0x1] sm:$0x1]
        %v829 = vlaneseq
        %v830 = vshrl.u32 %v829, 7
        %v831 = vsub.s32 0, %v830
        %v832 = vrot.slane %v828, %v831
        %v833 = vmul.f32 %v814, %v832
        %v834 = vmul.f32 %v815, %v832
        %v835 = vadd.f32 %v826, %v833
        %v836 = vadd.f32 %v827, %v834
        %837 = vrot.lane.b32.xlu0 %v814, 127
        %v838 = vpop.permute.xlu0 %837
        %839 = vrot.lane.b32.xlu0 %v815, 127
        %v840 = vpop.permute.xlu0 %839
        %v841 = vld [vmem:[%s820 + $0x2] sm:$0x1]
        %v842 = vlaneseq
        %v843 = vshrl.u32 %v842, 7
        %v844 = vsub.s32 0, %v843
        %v845 = vrot.slane %v841, %v844
        %v846 = vmul.f32 %v838, %v845
        %v847 = vmul.f32 %v840, %v845
        %v848 = vadd.f32 %v835, %v846
        %v849 = vadd.f32 %v836, %v847
        %v850 = vld [vmem:[#allocation2 + $0x1] sm:$0xff]
        %v851 = vld [vmem:[#allocation2 + $0x9] sm:$0xff]
        %852 = vrot.lane.b32.xlu0 %v850, 1
        %v853 = vpop.permute.xlu0 %852
        %854 = vrot.lane.b32.xlu0 %v851, 1
        %v855 = vpop.permute.xlu0 %854
        %v856 = vld [vmem:[%s820 + $0x3] sm:$0x1]
        %v857 = vlaneseq
        %v858 = vshrl.u32 %v857, 7
        %v859 = vsub.s32 0, %v858
        %v860 = vrot.slane %v856, %v859
        %v861 = vmul.f32 %v853, %v860
        %v862 = vmul.f32 %v855, %v860
        %v863 = vadd.f32 %v848, %v861
        %v864 = vadd.f32 %v849, %v862
        %v865 = vld [vmem:[%s820 + $0x4] sm:$0x1]
        %v866 = vlaneseq
        %v867 = vshrl.u32 %v866, 7
        %v868 = vsub.s32 0, %v867
        %v869 = vrot.slane %v865, %v868
        %v870 = vmul.f32 %v850, %v869
        %v871 = vmul.f32 %v851, %v869
        %v872 = vadd.f32 %v863, %v870
        %v873 = vadd.f32 %v864, %v871
        %874 = vrot.lane.b32.xlu0 %v850, 127
        %v875 = vpop.permute.xlu0 %874
        %876 = vrot.lane.b32.xlu0 %v851, 127
        %v877 = vpop.permute.xlu0 %876
        %v878 = vld [vmem:[%s820 + $0x5] sm:$0x1]
        %v879 = vlaneseq
        %v880 = vshrl.u32 %v879, 7
        %v881 = vsub.s32 0, %v880
        %v882 = vrot.slane %v878, %v881
        %v883 = vmul.f32 %v875, %v882
        %v884 = vmul.f32 %v877, %v882
        %v885 = vadd.f32 %v872, %v883
        %v886 = vadd.f32 %v873, %v884
        %v887 = vld [vmem:[#allocation2 + $0x2] sm:$0xff]
        %v888 = vld [vmem:[#allocation2 + $0xa] sm:$0xff]
        %889 = vrot.lane.b32.xlu0 %v887, 1
        %v890 = vpop.permute.xlu0 %889
        %891 = vrot.lane.b32.xlu0 %v888, 1
        %v892 = vpop.permute.xlu0 %891
        %v893 = vld [vmem:[%s820 + $0x6] sm:$0x1]
        %v894 = vlaneseq
        %v895 = vshrl.u32 %v894, 7
        %v896 = vsub.s32 0, %v895
        %v897 = vrot.slane %v893, %v896
        %v898 = vmul.f32 %v890, %v897
        %v899 = vmul.f32 %v892, %v897
        %v900 = vadd.f32 %v885, %v898
        %v901 = vadd.f32 %v886, %v899
        %v902 = vld [vmem:[%s820 + $0x7] sm:$0x1]
        %v903 = vlaneseq
        %v904 = vshrl.u32 %v903, 7
        %v905 = vsub.s32 0, %v904
        %v906 = vrot.slane %v902, %v905
        %v907 = vmul.f32 %v887, %v906
        %v908 = vmul.f32 %v888, %v906
        %v909 = vadd.f32 %v900, %v907
        %v910 = vadd.f32 %v901, %v908
        %911 = vrot.lane.b32.xlu0 %v887, 127
        %v912 = vpop.permute.xlu0 %911
        %913 = vrot.lane.b32.xlu0 %v888, 127
        %v914 = vpop.permute.xlu0 %913
        %v915 = vld [vmem:[%s820 + $0x8] sm:$0x1]
        %v916 = vlaneseq
        %v917 = vshrl.u32 %v916, 7
        %v918 = vsub.s32 0, %v917
        %v919 = vrot.slane %v915, %v918
        %v920 = vmul.f32 %v912, %v919
        %v921 = vmul.f32 %v914, %v919
        %v922 = vadd.f32 %v909, %v920
        %v923 = vadd.f32 %v910, %v921
        %s924 = scalar_lea.vmem %s2, 24
        %v925 = vld [vmem:[%s924] sm:$0x1]
        %v926 = vlaneseq
        %v927 = vshrl.u32 %v926, 7
        %v928 = vsub.s32 0, %v927
        %v929 = vrot.slane %v925, %v928
        %v930 = vmul.f32 %v922, %v929
        %v931 = vmul.f32 %v923, %v929
        %932 = vrot.lane.b32.xlu0 %v922, 16
        %v933 = vpop.permute.xlu0 %932
        %934 = vrot.lane.b32.xlu0 %v923, 16
        %v935 = vpop.permute.xlu0 %934
        %v936 = vld [vmem:[%s924 + $0x1] sm:$0x1]
        %v937 = vlaneseq
        %v938 = vshrl.u32 %v937, 7
        %v939 = vsub.s32 0, %v938
        %v940 = vrot.slane %v936, %v939
        %v941 = vmul.f32 %v933, %v940
        %v942 = vmul.f32 %v935, %v940
        %v943 = vadd.f32 %v930, %v941
        %v944 = vadd.f32 %v931, %v942
        %945 = vrot.lane.b32.xlu0 %v922, 32
        %v946 = vpop.permute.xlu0 %945
        %947 = vrot.lane.b32.xlu0 %v923, 32
        %v948 = vpop.permute.xlu0 %947
        %v949 = vld [vmem:[%s924 + $0x2] sm:$0x1]
        %v950 = vlaneseq
        %v951 = vshrl.u32 %v950, 7
        %v952 = vsub.s32 0, %v951
        %v953 = vrot.slane %v949, %v952
        %v954 = vmul.f32 %v946, %v953
        %v955 = vmul.f32 %v948, %v953
        %v956 = vadd.f32 %v943, %v954
        %v957 = vadd.f32 %v944, %v955
        %958 = vrot.lane.b32.xlu0 %v922, 48
        %v959 = vpop.permute.xlu0 %958
        %960 = vrot.lane.b32.xlu0 %v923, 48
        %v961 = vpop.permute.xlu0 %960
        %v962 = vld [vmem:[%s924 + $0x3] sm:$0x1]
        %v963 = vlaneseq
        %v964 = vshrl.u32 %v963, 7
        %v965 = vsub.s32 0, %v964
        %v966 = vrot.slane %v962, %v965
        %v967 = vmul.f32 %v959, %v966
        %v968 = vmul.f32 %v961, %v966
        %v969 = vadd.f32 %v956, %v967
        %v970 = vadd.f32 %v957, %v968
        %971 = vrot.lane.b32.xlu0 %v922, 64
        %v972 = vpop.permute.xlu0 %971
        %973 = vrot.lane.b32.xlu0 %v923, 64
        %v974 = vpop.permute.xlu0 %973
        %v975 = vld [vmem:[%s924 + $0x4] sm:$0x1]
        %v976 = vlaneseq
        %v977 = vshrl.u32 %v976, 7
        %v978 = vsub.s32 0, %v977
        %v979 = vrot.slane %v975, %v978
        %v980 = vmul.f32 %v972, %v979
        %v981 = vmul.f32 %v974, %v979
        %v982 = vadd.f32 %v969, %v980
        %v983 = vadd.f32 %v970, %v981
        %984 = vrot.lane.b32.xlu0 %v922, 80
        %v985 = vpop.permute.xlu0 %984
        %986 = vrot.lane.b32.xlu0 %v923, 80
        %v987 = vpop.permute.xlu0 %986
        %v988 = vld [vmem:[%s924 + $0x5] sm:$0x1]
        %v989 = vlaneseq
        %v990 = vshrl.u32 %v989, 7
        %v991 = vsub.s32 0, %v990
        %v992 = vrot.slane %v988, %v991
        %v993 = vmul.f32 %v985, %v992
        %v994 = vmul.f32 %v987, %v992
        %v995 = vadd.f32 %v982, %v993
        %v996 = vadd.f32 %v983, %v994
        %997 = vrot.lane.b32.xlu0 %v922, 96
        %v998 = vpop.permute.xlu0 %997
        %999 = vrot.lane.b32.xlu0 %v923, 96
        %v1000 = vpop.permute.xlu0 %999
        %v1001 = vld [vmem:[%s924 + $0x6] sm:$0x1]
        %v1002 = vlaneseq
        %v1003 = vshrl.u32 %v1002, 7
        %v1004 = vsub.s32 0, %v1003
        %v1005 = vrot.slane %v1001, %v1004
        %v1006 = vmul.f32 %v998, %v1005
        %v1007 = vmul.f32 %v1000, %v1005
        %v1008 = vadd.f32 %v995, %v1006
        %v1009 = vadd.f32 %v996, %v1007
        %1010 = vrot.lane.b32.xlu0 %v922, 112
        %v1011 = vpop.permute.xlu0 %1010
        %1012 = vrot.lane.b32.xlu0 %v923, 112
        %v1013 = vpop.permute.xlu0 %1012
        %v1014 = vld [vmem:[%s924 + $0x7] sm:$0x1]
        %v1015 = vlaneseq
        %v1016 = vshrl.u32 %v1015, 7
        %v1017 = vsub.s32 0, %v1016
        %v1018 = vrot.slane %v1014, %v1017
        %v1019 = vmul.f32 %v1011, %v1018
        %v1020 = vmul.f32 %v1013, %v1018
        %v1021 = vadd.f32 %v1008, %v1019
        %v1022 = vadd.f32 %v1009, %v1020
        %1023 = vst [vmem:[%s163] sm:$0xff] %v1021
        %1024 = vst [vmem:[%s163 + $0x8] sm:$0xff] %v1022
        %s1025 = sand.u32 %s93, 1
        %s1026 = scalar_lea.sflag [#allocation4], %s1025
        %s1027 = sand.u32 %s93, 1
        %s1028 = smul.addr %s1027, 16
        %s1029 = scalar_lea.vmem [#allocation3], %s1028
        // Predicated region
        $region33: #{tpu_custom_call.1} parent=31 // pred_check
          %p1030 = pneg %p103
        $region34: #{tpu_custom_call.1} parent=31 // pred_check_branch
          %1032 = sbr.rel (%p1030) target = $region36
        $region35: #{tpu_custom_call.1} parent=31 // pred_region
          %s1034 = ssub.s32 256, 256
          %1035 = vsyncadd %s1026, %s1034
          %s1036 = smul.addr %s17, 2
          %s1037 = smul.addr %s1036, 128
          %s1038 = scalar_lea.hbm %s3, %s1037
          %s1039 = sshll.u32 %s1029, 4
          %s1040 = int_to_ptr.vmem [resolvable:$true] %s1039
          %1045 = dma.vmem_to_hbm [thread:$0]  %s1040, 256, %s1038, %s1026, 128, 128, 8
        $region36: #{tpu_custom_call.1} parent=31 // pred_fallthru
          _
      $region32: #{tpu_custom_call.1} parent=5 // pred_fallthru
        _
      %p1046 = scmp.le.s32.totalorder 2, %s12
      // Predicated region
      $region37: #{tpu_custom_call.1} parent=5 // pred_check
        %p1047 = pneg %p1046
      $region38: #{tpu_custom_call.1} parent=5 // pred_check_branch
        %1049 = sbr.rel (%p1047) target = $region40
      $region39: #{tpu_custom_call.1} parent=5 // pred_region
        %s1050 = ssub.s32 %s12, 2
        // Predicated region
        $region41: #{tpu_custom_call.1} parent=39 // pred_check
          %p1051 = pneg %p109
        $region42: #{tpu_custom_call.1} parent=39 // pred_check_branch
          %1053 = sbr.rel (%p1051) target = $region44
        $region43: #{tpu_custom_call.1} parent=39 // pred_region
          %s1054 = sand.u32 %s94, 1
          %s1055 = scalar_lea.sflag [#allocation4], %s1054
          %s1056 = sand.u32 %s94, 1
          %s1057 = smul.addr %s1056, 16
          %s1058 = scalar_lea.vmem [#allocation3], %s1057
          %1059 = dma.done %s1055, 256
        $region44: #{tpu_custom_call.1} parent=39 // pred_fallthru
          _
      $region40: #{tpu_custom_call.1} parent=5 // pred_fallthru
        _
    $region6: #{tpu_custom_call.1} parent=1 // loop_footer
      %s16 = sadd.s32 1, %s12
    $region7: #{tpu_custom_call.1} parent=1 // loop_footer_branch
      %11 = sbr.rel target = $region3
    $region8: #{tpu_custom_call.1} parent=1 // loop_exit
      _
    %1060 = vsyncpa [#allocation4], 1
    %s1061 = scalar_lea.sflag [#allocation4], 1
    %1062 = vsyncpa %s1061, 1

</llo_original>
